<compile_context>
chip_gen: v7x
topology: tpu7x:2x2x1
jax: 0.10.0
libtpu: 0.0.40
codegen_flags: <defaults>
</compile_context>

<pallas_src>
import math
import functools

import jax
import jax.numpy as jnp
from jax.experimental import pallas as pl
from jax.experimental.pallas import tpu as pltpu

SQRT_2_OVER_PI = math.sqrt(2.0 / math.pi)


# ----------------------------------------------------------------------------
# Fused encoder kernel: one grid step == one TransformerEncoderBlock
# ----------------------------------------------------------------------------

def bert_encoder_kernel(tok_ref, pt_ref, bias_ref, eg_ref, eb_ref,
                        wqkv_ref, bqkv_ref, wffh_ref, bff_ref, lng_ref, lnb_ref,
                        o_ref, h_ref, *, num_heads):
    """h_ref: (B*S, D) f32 resident hidden state (VMEM scratch, persists over
    the layer grid).  Layer 0 also folds in the embedding sum + embedding LN."""
    layer = pl.program_id(0)
    M, D = h_ref.shape
    hd = D // num_heads
    inv_d = 1.0 / float(D)
    inv_scale = 1.0 / math.sqrt(float(D))      # reference divides by sqrt(dim_model)

    def layer_norm(y, gamma, beta, eps):
        mu = jnp.sum(y, axis=-1, keepdims=True) * inv_d
        c = y - mu
        var = jnp.sum(c * c, axis=-1, keepdims=True) * inv_d
        return c * jax.lax.rsqrt(var + eps) * gamma + beta      # rsqrt -> EUP

    # ---- layer 0: embeddings = LayerNorm(tok + pos + type), eps=1e-12 ----
    @pl.when(layer == 0)
    def _():
        h_ref[...] = layer_norm(tok_ref[...] + pt_ref[...],
                                eg_ref[...], eb_ref[...], 1e-12)

    x = h_ref[...]                                              # (M, D) f32

    # ---- fused Q/K/V projection: one (M, D) @ (D, 3D) bf16 MXU matmul ----
    qkv = jnp.dot(x.astype(jnp.bfloat16), wqkv_ref[0],
                  preferred_element_type=jnp.float32) + bqkv_ref[0]   # (M, 3D) f32

    # Fold the 1/sqrt(D) score scale into Q (cheaper than scaling (H, M, M)).
    q_scaled = (qkv[:, :D] * inv_scale).astype(jnp.bfloat16)
    kv_b = qkv[:, D:].astype(jnp.bfloat16)

    # ---- head-major (H, M, hd) layout via leading-dim stack of lane slices ----
    def heads(src, base):
        parts = [src[:, base + h * hd: base + (h + 1) * hd][None]
                 for h in range(num_heads)]
        return jnp.concatenate(parts, axis=0)                   # (H, M, hd) bf16

    qh = heads(q_scaled, 0)
    kh = heads(kv_b, 0)
    vh = heads(kv_b, D)

    # ---- attention: all heads & batch elements in one batched einsum.
    #      bias_ref holds (1 - mask_k) * -1e4 within a batch element and -1e9
    #      across batch elements (exactly zero probability after softmax).
    scores = jnp.einsum('hqd,hkd->hqk', qh, kh,
                        preferred_element_type=jnp.float32)      # (H, M, M) f32
    scores = scores + bias_ref[...][None]
    scores = scores - jnp.max(scores, axis=-1, keepdims=True)
    p = jnp.exp(scores)
    probs = p * pl.reciprocal(jnp.sum(p, axis=-1, keepdims=True), approx=True)
    ctx = jnp.einsum('hqk,hkd->hqd', probs.astype(jnp.bfloat16), vh,
                     preferred_element_type=jnp.float32)        # (H, M, hd) f32

    # ---- feed-forward consumed in head-major form:
    #      attn @ Wff == sum_h ctx_h @ Wff[h*hd:(h+1)*hd, :]   (no lane concat)
    ff = jnp.einsum('hmd,hdf->hmf', ctx.astype(jnp.bfloat16), wffh_ref[0],
                    preferred_element_type=jnp.float32)         # (H, M, D)
    ff = jnp.sum(ff, axis=0) + bff_ref[0]                       # (M, D) f32

    # ---- GELU (tanh approximation — exactly the reference GELU class) ----
    g = 0.5 * ff * (1.0 + jnp.tanh(SQRT_2_OVER_PI * (ff + 0.044715 * ff * ff * ff)))

    # ---- residual + LayerNorm(eps=1e-10); update resident hidden ----
    h_new = layer_norm(x + g, lng_ref[0], lnb_ref[0], 1e-10)
    h_ref[...] = h_new

    # ---- single HBM output write, at the last layer ----
    @pl.when(layer == pl.num_programs(0) - 1)
    def _():
        o_ref[...] = h_new.astype(o_ref.dtype)


# ----------------------------------------------------------------------------
# pallas_call wrapper
# ----------------------------------------------------------------------------

def bert_encoder(tok, pos_type, attn_bias, params, num_heads):
    M, D = tok.shape
    L = params["wqkv"].shape[0]
    H = num_heads
    hd = D // H

    kern = functools.partial(bert_encoder_kernel, num_heads=H)
    return pl.pallas_call(
        kern,
        out_shape=jax.ShapeDtypeStruct((M, D), jnp.float32),
        grid_spec=pltpu.PrefetchScalarGridSpec(
            num_scalar_prefetch=0,
            grid=(L,),
            in_specs=[
                # constant block index -> DMA'd once, kept resident in VMEM
                pl.BlockSpec((M, D), lambda l: (0, 0)),             # token embeddings
                pl.BlockSpec((M, D), lambda l: (0, 0)),             # pos + type embeddings
                pl.BlockSpec((M, M), lambda l: (0, 0)),             # additive attention bias
                pl.BlockSpec((1, D), lambda l: (0, 0)),             # embedding LN gamma
                pl.BlockSpec((1, D), lambda l: (0, 0)),             # embedding LN beta
                # per-layer weights: streamed (double-buffered) over the layer grid
                pl.BlockSpec((1, D, 3 * D), lambda l: (l, 0, 0)),   # Wqkv (bf16)
                pl.BlockSpec((1, 1, 3 * D), lambda l: (l, 0, 0)),   # bqkv
                pl.BlockSpec((1, H, hd, D), lambda l: (l, 0, 0, 0)),  # Wff per head (bf16)
                pl.BlockSpec((1, 1, D), lambda l: (l, 0, 0)),       # bff
                pl.BlockSpec((1, 1, D), lambda l: (l, 0, 0)),       # LN gamma
                pl.BlockSpec((1, 1, D), lambda l: (l, 0, 0)),       # LN beta
            ],
            out_specs=pl.BlockSpec((M, D), lambda l: (0, 0)),
            scratch_shapes=[pltpu.VMEM((M, D), jnp.float32)],       # resident hidden
        ),
        compiler_params=pltpu.CompilerParams(
            dimension_semantics=("arbitrary",),     # layers are sequential
            vmem_limit_bytes=32 * 1024 * 1024,
        ),
    )(tok, pos_type, attn_bias,
      params["emb_ln_gamma"], params["emb_ln_beta"],
      params["wqkv"], params["bqkv"], params["wff_heads"], params["bff"],
      params["ln_gamma"], params["ln_beta"])


# ----------------------------------------------------------------------------
# Parameter init + full model forward
# ----------------------------------------------------------------------------

def init_params(key, vocab_size, dim_model, max_seq_length, num_layers, num_heads):
    D = dim_model
    hd = D // num_heads
    keys = jax.random.split(key, 3 + 4 * num_layers)

    def w(k, shape):
        return 0.02 * jax.random.normal(k, shape, jnp.float32)

    wq = jnp.stack([w(keys[3 + 4 * i + 0], (D, D)) for i in range(num_layers)])
    wk = jnp.stack([w(keys[3 + 4 * i + 1], (D, D)) for i in range(num_layers)])
    wv = jnp.stack([w(keys[3 + 4 * i + 2], (D, D)) for i in range(num_layers)])
    wf = jnp.stack([w(keys[3 + 4 * i + 3], (D, D)) for i in range(num_layers)])

    return {
        "token_emb": w(keys[0], (vocab_size, D)),
        "pos_emb": w(keys[1], (max_seq_length, D)),
        # NOTE: reference sizes the token_type table by vocab_size (kept).
        "type_emb": w(keys[2], (vocab_size, D)),
        "emb_ln_gamma": jnp.ones((1, D), jnp.float32),
        "emb_ln_beta": jnp.zeros((1, D), jnp.float32),
        # fused per-layer QKV weight, bf16 for the MXU / halved weight DMA
        "wqkv": jnp.concatenate([wq, wk, wv], axis=2).astype(jnp.bfloat16),
        "bqkv": jnp.zeros((num_layers, 1, 3 * D), jnp.float32),
        # feed-forward weight pre-split by attention head: (L, H, hd, D)
        "wff_heads": wf.reshape(num_layers, num_heads, hd, D).astype(jnp.bfloat16),
        "bff": jnp.zeros((num_layers, 1, D), jnp.float32),
        "ln_gamma": jnp.ones((num_layers, 1, D), jnp.float32),
        "ln_beta": jnp.zeros((num_layers, 1, D), jnp.float32),
    }


def bert_forward(params, input_ids, attention_mask, num_heads):
    """input_ids: (B, S) int32; attention_mask: (B, S) (1 = attend, 0 = masked)."""
    B, S = input_ids.shape
    D = params["token_emb"].shape[1]
    M = B * S

    # Embedding-table gathers stay in plain JAX (glue); everything downstream
    # of the gathers runs inside the single fused Pallas kernel.
    tok = jnp.take(params["token_emb"], input_ids, axis=0).reshape(M, D)
    # position_ids = arange(S); token_type_ids = zeros -> type_emb row 0.
    pos_type = (jnp.tile(params["pos_emb"][:S], (B, 1))
                + params["type_emb"][0:1])                             # (M, D)

    # Block-diagonal additive attention bias: (1 - mask_k) * -10000 within each
    # batch element, -1e9 (== exactly zero probability) across batch elements.
    mask = attention_mask.astype(jnp.float32)                          # (B, S)
    neg_k = ((1.0 - mask) * (-10000.0)).reshape(M)                     # (M,)
    bid = jnp.repeat(jnp.arange(B, dtype=jnp.int32), S)                # (M,)
    same = bid[:, None] == bid[None, :]
    attn_bias = jnp.where(same, neg_k[None, :], jnp.float32(-1e9))     # (M, M)

    hidden_flat = bert_encoder(tok, pos_type, attn_bias, params, num_heads)
    hidden = hidden_flat.reshape(B, S, D)
    cls_output = hidden[:, 0]
    return cls_output, hidden


# ----------------------------------------------------------------------------
# Main
# ----------------------------------------------------------------------------

if __name__ == "__main__":
    batch = 2
    seq = 8
    dim_model = 32
    num_heads = 4
    num_layers = 2
    vocab_size = 64
    max_seq_length = 16

    key = jax.random.PRNGKey(0)
    kp, kid = jax.random.split(key)

    params = init_params(kp, vocab_size, dim_model, max_seq_length,
                         num_layers, num_heads)
    input_ids = jax.random.randint(kid, (batch, seq), 0, vocab_size, dtype=jnp.int32)
    attention_mask = jnp.ones((batch, seq), dtype=jnp.float32)
    attention_mask = attention_mask.at[:, -2:].set(0.0)   # mask last two tokens

    cls_out, hidden = bert_forward(params, input_ids, attention_mask, num_heads)
    jax.block_until_ready((cls_out, hidden))

    assert cls_out.shape == (batch, dim_model)
    assert hidden.shape == (batch, seq, dim_model)
    assert bool(jnp.all(jnp.isfinite(cls_out))) and bool(jnp.all(jnp.isfinite(hidden)))

    print("KERNEL_OK")
</pallas_src>

<mosaic_0001>
module attributes {stable_mosaic.version = 11 : i64} {
  func.func @bert_encoder_kernel(%arg0: i32, %arg1: memref<16x32xf32, #tpu.memory_space<vmem>>, %arg2: memref<16x32xf32, #tpu.memory_space<vmem>>, %arg3: memref<16x16xf32, #tpu.memory_space<vmem>>, %arg4: memref<1x32xf32, #tpu.memory_space<vmem>>, %arg5: memref<1x32xf32, #tpu.memory_space<vmem>>, %arg6: memref<1x32x96xbf16, #tpu.memory_space<vmem>>, %arg7: memref<1x1x96xf32, #tpu.memory_space<vmem>>, %arg8: memref<1x4x8x32xbf16, #tpu.memory_space<vmem>>, %arg9: memref<1x1x32xf32, #tpu.memory_space<vmem>>, %arg10: memref<1x1x32xf32, #tpu.memory_space<vmem>>, %arg11: memref<1x1x32xf32, #tpu.memory_space<vmem>>, %arg12: memref<16x32xf32, #tpu.memory_space<vmem>>, %arg13: memref<16x32xf32, #tpu.memory_space<vmem>>) attributes {dimension_semantics = [#tpu.dimension_semantics<arbitrary>], iteration_bounds = array<i64: 2>, scalar_prefetch = 0 : i64, scratch_operands = 1 : i64, tpu.core_type = #tpu.core_type<tc>, window_params = [{pipeline_mode = #tpu.pipeline_mode<synchronous>, transform_indices = @transform_0, window_bounds = array<i64: 16, 32>}, {pipeline_mode = #tpu.pipeline_mode<synchronous>, transform_indices = @transform_1, window_bounds = array<i64: 16, 32>}, {pipeline_mode = #tpu.pipeline_mode<synchronous>, transform_indices = @transform_2, window_bounds = array<i64: 16, 16>}, {pipeline_mode = #tpu.pipeline_mode<synchronous>, transform_indices = @transform_3, window_bounds = array<i64: 1, 32>}, {pipeline_mode = #tpu.pipeline_mode<synchronous>, transform_indices = @transform_4, window_bounds = array<i64: 1, 32>}, {transform_indices = @transform_5, window_bounds = array<i64: 1, 32, 96>}, {transform_indices = @transform_6, window_bounds = array<i64: 1, 1, 96>}, {transform_indices = @transform_7, window_bounds = array<i64: 1, 4, 8, 32>}, {transform_indices = @transform_8, window_bounds = array<i64: 1, 1, 32>}, {transform_indices = @transform_9, window_bounds = array<i64: 1, 1, 32>}, {transform_indices = @transform_10, window_bounds = array<i64: 1, 1, 32>}, {pipeline_mode = #tpu.pipeline_mode<synchronous>, transform_indices = @transform_11, window_bounds = array<i64: 16, 32>}]} {
    %c0_i32 = arith.constant 0 : i32
    %0 = arith.cmpi eq, %arg0, %c0_i32 : i32
    %1 = arith.extui %0 : i1 to i32
    %c0_i32_0 = arith.constant 0 : i32
    %2 = arith.cmpi ne, %1, %c0_i32_0 : i32
    scf.if %2 {
      %c0_42 = arith.constant 0 : index
      %c0_43 = arith.constant 0 : index
      %113 = vector.load %arg1[%c0_42, %c0_43] : memref<16x32xf32, #tpu.memory_space<vmem>>, vector<16x32xf32>
      %c0_44 = arith.constant 0 : index
      %c0_45 = arith.constant 0 : index
      %114 = vector.load %arg2[%c0_44, %c0_45] : memref<16x32xf32, #tpu.memory_space<vmem>>, vector<16x32xf32>
      %115 = arith.addf %113, %114 : vector<16x32xf32>
      %c0_46 = arith.constant 0 : index
      %c0_47 = arith.constant 0 : index
      %116 = vector.load %arg4[%c0_46, %c0_47] : memref<1x32xf32, #tpu.memory_space<vmem>>, vector<1x32xf32>
      %c0_48 = arith.constant 0 : index
      %c0_49 = arith.constant 0 : index
      %117 = vector.load %arg5[%c0_48, %c0_49] : memref<1x32xf32, #tpu.memory_space<vmem>>, vector<1x32xf32>
      %cst_50 = arith.constant dense<0.000000e+00> : vector<16xf32>
      %118 = vector.multi_reduction <add>, %115, %cst_50 [1] : vector<16x32xf32> to vector<16xf32>
      %119 = vector.shape_cast %118 : vector<16xf32> to vector<16x1xf32>
      %cst_51 = arith.constant 3.125000e-02 : f32
      %120 = vector.broadcast %cst_51 : f32 to vector<16x1xf32>
      %121 = arith.mulf %119, %120 : vector<16x1xf32>
      %122 = vector.broadcast %121 : vector<16x1xf32> to vector<16x32xf32>
      %123 = arith.subf %115, %122 : vector<16x32xf32>
      %124 = arith.mulf %123, %123 : vector<16x32xf32>
      %cst_52 = arith.constant dense<0.000000e+00> : vector<16xf32>
      %125 = vector.multi_reduction <add>, %124, %cst_52 [1] : vector<16x32xf32> to vector<16xf32>
      %126 = vector.shape_cast %125 : vector<16xf32> to vector<16x1xf32>
      %cst_53 = arith.constant 3.125000e-02 : f32
      %127 = vector.broadcast %cst_53 : f32 to vector<16x1xf32>
      %128 = arith.mulf %126, %127 : vector<16x1xf32>
      %cst_54 = arith.constant 9.99999996E-13 : f32
      %129 = vector.broadcast %cst_54 : f32 to vector<16x1xf32>
      %130 = arith.addf %128, %129 : vector<16x1xf32>
      %131 = math.rsqrt %130 : vector<16x1xf32>
      %132 = vector.broadcast %131 : vector<16x1xf32> to vector<16x32xf32>
      %133 = arith.mulf %123, %132 : vector<16x32xf32>
      %134 = vector.broadcast %116 : vector<1x32xf32> to vector<16x32xf32>
      %135 = arith.mulf %133, %134 : vector<16x32xf32>
      %136 = vector.broadcast %117 : vector<1x32xf32> to vector<16x32xf32>
      %137 = arith.addf %135, %136 : vector<16x32xf32>
      %c0_55 = arith.constant 0 : index
      %c0_56 = arith.constant 0 : index
      %138 = vector.load %arg13[%c0_55, %c0_56] : memref<16x32xf32, #tpu.memory_space<vmem>>, vector<16x32xf32>
      tpu.vector_store %arg13[%c0_55, %c0_56], %137 {strides = array<i32>} : memref<16x32xf32, #tpu.memory_space<vmem>>, vector<16x32xf32>,
    } else {
    }
    %c0 = arith.constant 0 : index
    %c0_1 = arith.constant 0 : index
    %3 = vector.load %arg13[%c0, %c0_1] : memref<16x32xf32, #tpu.memory_space<vmem>>, vector<16x32xf32>
    %4 = arith.truncf %3 : vector<16x32xf32> to vector<16x32xbf16>
    %c0_2 = arith.constant 0 : index
    %c0_3 = arith.constant 0 : index
    %c0_4 = arith.constant 0 : index
    %5 = vector.load %arg6[%c0_2, %c0_3, %c0_4] : memref<1x32x96xbf16, #tpu.memory_space<vmem>>, vector<1x32x96xbf16>
    %6 = vector.shape_cast %5 : vector<1x32x96xbf16> to vector<32x96xbf16>
    %cst = arith.constant dense<0.000000e+00> : vector<16x96xf32>
    %7 = tpu.matmul %4, %6, %cst {dimension_numbers = #tpu.dot_dimension_numbers<[1], [0], [0], [1], [0, 0, 1, 1], [], []>} : vector<16x32xbf16>, vector<32x96xbf16>, vector<16x96xf32> -> vector<16x96xf32>
    %c0_5 = arith.constant 0 : index
    %c0_6 = arith.constant 0 : index
    %c0_7 = arith.constant 0 : index
    %8 = vector.load %arg7[%c0_5, %c0_6, %c0_7] : memref<1x1x96xf32, #tpu.memory_space<vmem>>, vector<1x1x96xf32>
    %9 = vector.shape_cast %8 : vector<1x1x96xf32> to vector<1x96xf32>
    %10 = vector.broadcast %9 : vector<1x96xf32> to vector<16x96xf32>
    %11 = arith.addf %7, %10 : vector<16x96xf32>
    %12 = vector.extract_strided_slice %11 {offsets = [0, 0], sizes = [16, 32], strides = [1, 1]} : vector<16x96xf32> to vector<16x32xf32>
    %cst_8 = arith.constant 0.176776692 : f32
    %13 = vector.broadcast %cst_8 : f32 to vector<16x32xf32>
    %14 = arith.mulf %12, %13 : vector<16x32xf32>
    %15 = arith.truncf %14 : vector<16x32xf32> to vector<16x32xbf16>
    %16 = vector.extract_strided_slice %11 {offsets = [0, 32], sizes = [16, 64], strides = [1, 1]} : vector<16x96xf32> to vector<16x64xf32>
    %17 = arith.truncf %16 : vector<16x64xf32> to vector<16x64xbf16>
    %18 = vector.extract_strided_slice %15 {offsets = [0, 0], sizes = [16, 8], strides = [1, 1]} : vector<16x32xbf16> to vector<16x8xbf16>
    %19 = vector.shape_cast %18 : vector<16x8xbf16> to vector<1x16x8xbf16>
    %20 = vector.extract_strided_slice %15 {offsets = [0, 8], sizes = [16, 8], strides = [1, 1]} : vector<16x32xbf16> to vector<16x8xbf16>
    %21 = vector.shape_cast %20 : vector<16x8xbf16> to vector<1x16x8xbf16>
    %22 = vector.extract_strided_slice %15 {offsets = [0, 16], sizes = [16, 8], strides = [1, 1]} : vector<16x32xbf16> to vector<16x8xbf16>
    %23 = vector.shape_cast %22 : vector<16x8xbf16> to vector<1x16x8xbf16>
    %24 = vector.extract_strided_slice %15 {offsets = [0, 24], sizes = [16, 8], strides = [1, 1]} : vector<16x32xbf16> to vector<16x8xbf16>
    %25 = vector.shape_cast %24 : vector<16x8xbf16> to vector<1x16x8xbf16>
    %26 = tpu.concatenate %19, %21, %23, %25 in 0 : vector<1x16x8xbf16>, vector<1x16x8xbf16>, vector<1x16x8xbf16>, vector<1x16x8xbf16> -> vector<4x16x8xbf16>
    %27 = vector.extract_strided_slice %17 {offsets = [0, 0], sizes = [16, 8], strides = [1, 1]} : vector<16x64xbf16> to vector<16x8xbf16>
    %28 = vector.shape_cast %27 : vector<16x8xbf16> to vector<1x16x8xbf16>
    %29 = vector.extract_strided_slice %17 {offsets = [0, 8], sizes = [16, 8], strides = [1, 1]} : vector<16x64xbf16> to vector<16x8xbf16>
    %30 = vector.shape_cast %29 : vector<16x8xbf16> to vector<1x16x8xbf16>
    %31 = vector.extract_strided_slice %17 {offsets = [0, 16], sizes = [16, 8], strides = [1, 1]} : vector<16x64xbf16> to vector<16x8xbf16>
    %32 = vector.shape_cast %31 : vector<16x8xbf16> to vector<1x16x8xbf16>
    %33 = vector.extract_strided_slice %17 {offsets = [0, 24], sizes = [16, 8], strides = [1, 1]} : vector<16x64xbf16> to vector<16x8xbf16>
    %34 = vector.shape_cast %33 : vector<16x8xbf16> to vector<1x16x8xbf16>
    %35 = tpu.concatenate %28, %30, %32, %34 in 0 : vector<1x16x8xbf16>, vector<1x16x8xbf16>, vector<1x16x8xbf16>, vector<1x16x8xbf16> -> vector<4x16x8xbf16>
    %36 = vector.extract_strided_slice %17 {offsets = [0, 32], sizes = [16, 8], strides = [1, 1]} : vector<16x64xbf16> to vector<16x8xbf16>
    %37 = vector.shape_cast %36 : vector<16x8xbf16> to vector<1x16x8xbf16>
    %38 = vector.extract_strided_slice %17 {offsets = [0, 40], sizes = [16, 8], strides = [1, 1]} : vector<16x64xbf16> to vector<16x8xbf16>
    %39 = vector.shape_cast %38 : vector<16x8xbf16> to vector<1x16x8xbf16>
    %40 = vector.extract_strided_slice %17 {offsets = [0, 48], sizes = [16, 8], strides = [1, 1]} : vector<16x64xbf16> to vector<16x8xbf16>
    %41 = vector.shape_cast %40 : vector<16x8xbf16> to vector<1x16x8xbf16>
    %42 = vector.extract_strided_slice %17 {offsets = [0, 56], sizes = [16, 8], strides = [1, 1]} : vector<16x64xbf16> to vector<16x8xbf16>
    %43 = vector.shape_cast %42 : vector<16x8xbf16> to vector<1x16x8xbf16>
    %44 = tpu.concatenate %37, %39, %41, %43 in 0 : vector<1x16x8xbf16>, vector<1x16x8xbf16>, vector<1x16x8xbf16>, vector<1x16x8xbf16> -> vector<4x16x8xbf16>
    "tpu.trace_start"() <{level = 10 : i32, message = "hqd,hkd->hqk"}> : () -> ()
    %cst_9 = arith.constant dense<0.000000e+00> : vector<4x16x16xf32>
    %45 = tpu.matmul %26, %35, %cst_9 {dimension_numbers = #tpu.dot_dimension_numbers<[2], [2], [1], [1], [0, 0, 0, 1, 1, 1], [0], [0]>} : vector<4x16x8xbf16>, vector<4x16x8xbf16>, vector<4x16x16xf32> -> vector<4x16x16xf32>
    "tpu.trace_stop"() : () -> ()
    %c0_10 = arith.constant 0 : index
    %c0_11 = arith.constant 0 : index
    %46 = vector.load %arg3[%c0_10, %c0_11] : memref<16x16xf32, #tpu.memory_space<vmem>>, vector<16x16xf32>
    %47 = vector.shape_cast %46 : vector<16x16xf32> to vector<1x16x16xf32>
    %48 = vector.broadcast %47 : vector<1x16x16xf32> to vector<4x16x16xf32>
    %49 = arith.addf %45, %48 : vector<4x16x16xf32>
    %cst_12 = arith.constant dense<0xFF800000> : vector<4x16xf32>
    %50 = vector.multi_reduction <maximumf>, %49, %cst_12 [2] : vector<4x16x16xf32> to vector<4x16xf32>
    %51 = vector.shape_cast %50 : vector<4x16xf32> to vector<4x16x1xf32>
    %52 = vector.broadcast %51 : vector<4x16x1xf32> to vector<4x16x16xf32>
    %53 = arith.subf %49, %52 : vector<4x16x16xf32>
    %54 = math.exp %53 : vector<4x16x16xf32>
    %cst_13 = arith.constant dense<0.000000e+00> : vector<4x16xf32>
    %55 = vector.multi_reduction <add>, %54, %cst_13 [2] : vector<4x16x16xf32> to vector<4x16xf32>
    %56 = vector.shape_cast %55 : vector<4x16xf32> to vector<4x16x1xf32>
    %57 = tpu.reciprocal %56 {approx = true} : vector<4x16x1xf32> -> vector<4x16x1xf32>
    %58 = vector.broadcast %57 : vector<4x16x1xf32> to vector<4x16x16xf32>
    %59 = arith.mulf %54, %58 : vector<4x16x16xf32>
    %60 = arith.truncf %59 : vector<4x16x16xf32> to vector<4x16x16xbf16>
    "tpu.trace_start"() <{level = 10 : i32, message = "hqk,hkd->hqd"}> : () -> ()
    %cst_14 = arith.constant dense<0.000000e+00> : vector<4x16x8xf32>
    %61 = tpu.matmul %60, %44, %cst_14 {dimension_numbers = #tpu.dot_dimension_numbers<[2], [1], [1], [2], [0, 0, 0, 1, 1, 2], [0], [0]>} : vector<4x16x16xbf16>, vector<4x16x8xbf16>, vector<4x16x8xf32> -> vector<4x16x8xf32>
    "tpu.trace_stop"() : () -> ()
    %62 = arith.truncf %61 : vector<4x16x8xf32> to vector<4x16x8xbf16>
    %c0_15 = arith.constant 0 : index
    %c0_16 = arith.constant 0 : index
    %c0_17 = arith.constant 0 : index
    %c0_18 = arith.constant 0 : index
    %63 = vector.load %arg8[%c0_15, %c0_16, %c0_17, %c0_18] : memref<1x4x8x32xbf16, #tpu.memory_space<vmem>>, vector<1x4x8x32xbf16>
    %64 = vector.shape_cast %63 : vector<1x4x8x32xbf16> to vector<4x8x32xbf16>
    "tpu.trace_start"() <{level = 10 : i32, message = "hmd,hdf->hmf"}> : () -> ()
    %cst_19 = arith.constant dense<0.000000e+00> : vector<4x16x32xf32>
    %65 = tpu.matmul %62, %64, %cst_19 {dimension_numbers = #tpu.dot_dimension_numbers<[2], [1], [1], [2], [0, 0, 0, 1, 1, 2], [0], [0]>} : vector<4x16x8xbf16>, vector<4x8x32xbf16>, vector<4x16x32xf32> -> vector<4x16x32xf32>
    "tpu.trace_stop"() : () -> ()
    %cst_20 = arith.constant dense<0.000000e+00> : vector<16x32xf32>
    %66 = vector.multi_reduction <add>, %65, %cst_20 [0] : vector<4x16x32xf32> to vector<16x32xf32>
    %c0_21 = arith.constant 0 : index
    %c0_22 = arith.constant 0 : index
    %c0_23 = arith.constant 0 : index
    %67 = vector.load %arg9[%c0_21, %c0_22, %c0_23] : memref<1x1x32xf32, #tpu.memory_space<vmem>>, vector<1x1x32xf32>
    %68 = vector.shape_cast %67 : vector<1x1x32xf32> to vector<1x32xf32>
    %69 = vector.broadcast %68 : vector<1x32xf32> to vector<16x32xf32>
    %70 = arith.addf %66, %69 : vector<16x32xf32>
    %cst_24 = arith.constant 5.000000e-01 : f32
    %71 = vector.broadcast %cst_24 : f32 to vector<16x32xf32>
    %72 = arith.mulf %71, %70 : vector<16x32xf32>
    %cst_25 = arith.constant 4.471500e-02 : f32
    %73 = vector.broadcast %cst_25 : f32 to vector<16x32xf32>
    %74 = arith.mulf %73, %70 : vector<16x32xf32>
    %75 = arith.mulf %74, %70 : vector<16x32xf32>
    %76 = arith.mulf %75, %70 : vector<16x32xf32>
    %77 = arith.addf %70, %76 : vector<16x32xf32>
    %cst_26 = arith.constant 0.797884583 : f32
    %78 = vector.broadcast %cst_26 : f32 to vector<16x32xf32>
    %79 = arith.mulf %78, %77 : vector<16x32xf32>
    %80 = math.tanh %79 : vector<16x32xf32>
    %cst_27 = arith.constant 1.000000e+00 : f32
    %81 = vector.broadcast %cst_27 : f32 to vector<16x32xf32>
    %82 = arith.addf %81, %80 : vector<16x32xf32>
    %83 = arith.mulf %72, %82 : vector<16x32xf32>
    %84 = arith.addf %3, %83 : vector<16x32xf32>
    %c0_28 = arith.constant 0 : index
    %c0_29 = arith.constant 0 : index
    %c0_30 = arith.constant 0 : index
    %85 = vector.load %arg10[%c0_28, %c0_29, %c0_30] : memref<1x1x32xf32, #tpu.memory_space<vmem>>, vector<1x1x32xf32>
    %86 = vector.shape_cast %85 : vector<1x1x32xf32> to vector<1x32xf32>
    %c0_31 = arith.constant 0 : index
    %c0_32 = arith.constant 0 : index
    %c0_33 = arith.constant 0 : index
    %87 = vector.load %arg11[%c0_31, %c0_32, %c0_33] : memref<1x1x32xf32, #tpu.memory_space<vmem>>, vector<1x1x32xf32>
    %88 = vector.shape_cast %87 : vector<1x1x32xf32> to vector<1x32xf32>
    %cst_34 = arith.constant dense<0.000000e+00> : vector<16xf32>
    %89 = vector.multi_reduction <add>, %84, %cst_34 [1] : vector<16x32xf32> to vector<16xf32>
    %90 = vector.shape_cast %89 : vector<16xf32> to vector<16x1xf32>
    %cst_35 = arith.constant 3.125000e-02 : f32
    %91 = vector.broadcast %cst_35 : f32 to vector<16x1xf32>
    %92 = arith.mulf %90, %91 : vector<16x1xf32>
    %93 = vector.broadcast %92 : vector<16x1xf32> to vector<16x32xf32>
    %94 = arith.subf %84, %93 : vector<16x32xf32>
    %95 = arith.mulf %94, %94 : vector<16x32xf32>
    %cst_36 = arith.constant dense<0.000000e+00> : vector<16xf32>
    %96 = vector.multi_reduction <add>, %95, %cst_36 [1] : vector<16x32xf32> to vector<16xf32>
    %97 = vector.shape_cast %96 : vector<16xf32> to vector<16x1xf32>
    %cst_37 = arith.constant 3.125000e-02 : f32
    %98 = vector.broadcast %cst_37 : f32 to vector<16x1xf32>
    %99 = arith.mulf %97, %98 : vector<16x1xf32>
    %cst_38 = arith.constant 1.000000e-10 : f32
    %100 = vector.broadcast %cst_38 : f32 to vector<16x1xf32>
    %101 = arith.addf %99, %100 : vector<16x1xf32>
    %102 = math.rsqrt %101 : vector<16x1xf32>
    %103 = vector.broadcast %102 : vector<16x1xf32> to vector<16x32xf32>
    %104 = arith.mulf %94, %103 : vector<16x32xf32>
    %105 = vector.broadcast %86 : vector<1x32xf32> to vector<16x32xf32>
    %106 = arith.mulf %104, %105 : vector<16x32xf32>
    %107 = vector.broadcast %88 : vector<1x32xf32> to vector<16x32xf32>
    %108 = arith.addf %106, %107 : vector<16x32xf32>
    %c0_39 = arith.constant 0 : index
    %c0_40 = arith.constant 0 : index
    %109 = vector.load %arg13[%c0_39, %c0_40] : memref<16x32xf32, #tpu.memory_space<vmem>>, vector<16x32xf32>
    tpu.vector_store %arg13[%c0_39, %c0_40], %108 {strides = array<i32>} : memref<16x32xf32, #tpu.memory_space<vmem>>, vector<16x32xf32>,
    %c1_i32 = arith.constant 1 : i32
    %110 = arith.cmpi eq, %arg0, %c1_i32 : i32
    %111 = arith.extui %110 : i1 to i32
    %c0_i32_41 = arith.constant 0 : i32
    %112 = arith.cmpi ne, %111, %c0_i32_41 : i32
    scf.if %112 {
      %c0_42 = arith.constant 0 : index
      %c0_43 = arith.constant 0 : index
      %113 = vector.load %arg12[%c0_42, %c0_43] : memref<16x32xf32, #tpu.memory_space<vmem>>, vector<16x32xf32>
      tpu.vector_store %arg12[%c0_42, %c0_43], %108 {strides = array<i32>} : memref<16x32xf32, #tpu.memory_space<vmem>>, vector<16x32xf32>,
    } else {
    }
    return
  }
  func.func @transform_0(%arg0: i32) -> (i32, i32) {
    %c0_i32 = arith.constant 0 : i32
    %c0_i32_0 = arith.constant 0 : i32
    %c0_i32_1 = arith.constant 0 : i32
    return %c0_i32, %c0_i32_0 : i32, i32
  }
  func.func @transform_1(%arg0: i32) -> (i32, i32) {
    %c0_i32 = arith.constant 0 : i32
    %c0_i32_0 = arith.constant 0 : i32
    %c0_i32_1 = arith.constant 0 : i32
    return %c0_i32, %c0_i32_0 : i32, i32
  }
  func.func @transform_2(%arg0: i32) -> (i32, i32) {
    %c0_i32 = arith.constant 0 : i32
    %c0_i32_0 = arith.constant 0 : i32
    %c0_i32_1 = arith.constant 0 : i32
    return %c0_i32, %c0_i32_0 : i32, i32
  }
  func.func @transform_3(%arg0: i32) -> (i32, i32) {
    %c0_i32 = arith.constant 0 : i32
    %c0_i32_0 = arith.constant 0 : i32
    %c0_i32_1 = arith.constant 0 : i32
    return %c0_i32, %c0_i32_0 : i32, i32
  }
  func.func @transform_4(%arg0: i32) -> (i32, i32) {
    %c0_i32 = arith.constant 0 : i32
    %c0_i32_0 = arith.constant 0 : i32
    %c0_i32_1 = arith.constant 0 : i32
    return %c0_i32, %c0_i32_0 : i32, i32
  }
  func.func @transform_5(%arg0: i32) -> (i32, i32, i32) {
    %c0_i32 = arith.constant 0 : i32
    %c0_i32_0 = arith.constant 0 : i32
    %c0_i32_1 = arith.constant 0 : i32
    return %arg0, %c0_i32, %c0_i32_0 : i32, i32, i32
  }
  func.func @transform_6(%arg0: i32) -> (i32, i32, i32) {
    %c0_i32 = arith.constant 0 : i32
    %c0_i32_0 = arith.constant 0 : i32
    %c0_i32_1 = arith.constant 0 : i32
    return %arg0, %c0_i32, %c0_i32_0 : i32, i32, i32
  }
  func.func @transform_7(%arg0: i32) -> (i32, i32, i32, i32) {
    %c0_i32 = arith.constant 0 : i32
    %c0_i32_0 = arith.constant 0 : i32
    %c0_i32_1 = arith.constant 0 : i32
    %c0_i32_2 = arith.constant 0 : i32
    return %arg0, %c0_i32, %c0_i32_0, %c0_i32_1 : i32, i32, i32, i32
  }
  func.func @transform_8(%arg0: i32) -> (i32, i32, i32) {
    %c0_i32 = arith.constant 0 : i32
    %c0_i32_0 = arith.constant 0 : i32
    %c0_i32_1 = arith.constant 0 : i32
    return %arg0, %c0_i32, %c0_i32_0 : i32, i32, i32
  }
  func.func @transform_9(%arg0: i32) -> (i32, i32, i32) {
    %c0_i32 = arith.constant 0 : i32
    %c0_i32_0 = arith.constant 0 : i32
    %c0_i32_1 = arith.constant 0 : i32
    return %arg0, %c0_i32, %c0_i32_0 : i32, i32, i32
  }
  func.func @transform_10(%arg0: i32) -> (i32, i32, i32) {
    %c0_i32 = arith.constant 0 : i32
    %c0_i32_0 = arith.constant 0 : i32
    %c0_i32_1 = arith.constant 0 : i32
    return %arg0, %c0_i32, %c0_i32_0 : i32, i32, i32
  }
  func.func @transform_11(%arg0: i32) -> (i32, i32) {
    %c0_i32 = arith.constant 0 : i32
    %c0_i32_0 = arith.constant 0 : i32
    %c0_i32_1 = arith.constant 0 : i32
    return %c0_i32, %c0_i32_0 : i32, i32
  }
}

</mosaic_0001>

<llo_original>
// kernel: tpu_custom_call.1
$region0: #{tpu_custom_call.1}
  #allocation0 [shape = 'u32[]', space=smem, size = 0x4, offset = 0x4, fixed_abs, tag = 'smem constant byte address 0x4 - core index']
  #allocation1 [shape = 'u32[144,128]{1,0:T(1,128)}', space=vmem, size = 0x12000, scoped, tag = 'internal scratch']
  #allocation2 [shape = 'f32[16,32]{1,0:T(8,128)}', space=vmem, size = 0x2000, scoped, tag = 'scratch operand']
  %s0 = inlined_call_operand.hbm [shape: f32[16,32], index: 0, kind: input, shape index: {}]
  %s1 = inlined_call_operand.hbm [shape: f32[16,32], index: 1, kind: input, shape index: {}]
  %s2 = inlined_call_operand.hbm [shape: f32[16,16], index: 2, kind: input, shape index: {}]
  %s3 = inlined_call_operand.vmem [shape: f32[1,32], index: 3, kind: input, shape index: {}]
  %s4 = inlined_call_operand.vmem [shape: f32[1,32], index: 4, kind: input, shape index: {}]
  %s5 = inlined_call_operand.hbm [shape: bf16[2,32,96], index: 5, kind: input, shape index: {}]
  %s6 = inlined_call_operand.vmem [shape: f32[2,1,96], index: 6, kind: input, shape index: {}]
  %s7 = inlined_call_operand.hbm [shape: bf16[2,4,8,32], index: 7, kind: input, shape index: {}]
  %s8 = inlined_call_operand.vmem [shape: f32[2,1,32], index: 8, kind: input, shape index: {}]
  %s9 = inlined_call_operand.vmem [shape: f32[2,1,32], index: 9, kind: input, shape index: {}]
  %s10 = inlined_call_operand.vmem [shape: f32[2,1,32], index: 10, kind: input, shape index: {}]
  %s11 = inlined_call_operand.hbm [shape: f32[16,32], index: 11, kind: output, shape index: {}]
  %s12 = sld [smem:[#allocation0]]
  $region105: #{tpu_custom_call.1} parent=0
    _
  %s14 = ssub.s32 1, %s12
  %s15 = scalar_select 0, %s14, %s12
  $region1: #{tpu_custom_call.1} parent=0
    #allocation3 [shape = 'u8[8192]{0}', space=vmem, size = 0x2000, scoped, tag = 'input window, operand 0, single buffered']
    #allocation4 [shape = 's32[2]{0}', space=sflag, size = 0x8, scoped, tag = 'scoped memory for tpu_custom_call.1']
    #allocation5 [shape = 's32[2]{0}', space=sflag, size = 0x8, scoped, tag = 'scoped memory for tpu_custom_call.1']
    #allocation6 [shape = 'u8[8192]{0}', space=vmem, size = 0x2000, scoped, tag = 'input window, operand 1, single buffered']
    #allocation7 [shape = 's32[1]{0}', space=sflag, size = 0x4, scoped, tag = 'scoped memory for tpu_custom_call.1']
    #allocation8 [shape = 'u8[8192]{0}', space=vmem, size = 0x2000, scoped, tag = 'input window, operand 2, single buffered']
    #allocation9 [shape = 'u8[16384]{0}', space=vmem, size = 0x4000, scoped, tag = 'input window, operand 5']
    #allocation10 [shape = 's32[2]{0}', space=sflag, size = 0x8, scoped, tag = 'scoped memory for tpu_custom_call.1']
    #allocation11 [shape = 'u8[16384]{0}', space=vmem, size = 0x4000, scoped, tag = 'input window, operand 7']
    #allocation12 [shape = 'u8[8192]{0}', space=vmem, size = 0x2000, scoped, tag = 'output window, operand 0, single buffered']
    %16 = vsyncpa [#allocation4], 0
    %17 = vsyncpa [#allocation7], 0
    %18 = vsyncpa [#allocation10], 0
    %s19 = scalar_lea.sflag [#allocation10], 1
    %20 = vsyncpa %s19, 0
    %21 = vsyncpa [#allocation5], 0
    loop: start=0, step=1, limit=4
    $region2: #{tpu_custom_call.1} parent=1 // loop_pre_header
      _
    $region3: #{tpu_custom_call.1} parent=1 // loop_header
      %s23 = sphi 0, %s27
      %p24 = scmp.ge.s32.totalorder %s23, 4
      %s31 = sphi 0, %s31
      %s33 = sphi 0, %s31
      %s34 = sphi 0, %s33
      %s48 = sphi 0, %s34
      %s52 = sphi 0, %s52
      %s54 = sphi 0, %s52
      %s55 = sphi 0, %s54
      %s69 = sphi 0, %s55
      %s73 = sphi 0, %s73
      %s75 = sphi 0, %s73
      %s76 = sphi 0, %s75
      %s90 = sphi 0, %s76
      %s94 = sphi 0, %s94
      %s96 = sphi 0, %s94
      %s97 = sphi 0, %s96
      %s111 = sphi 0, %s97
      %s115 = sphi 0, %s115
      %s117 = sphi 0, %s115
      %s118 = sphi 0, %s117
      %s132 = sphi 0, %s118
      %s138 = sphi 0, %s140
      %s141 = sphi 0, %s138
      %s142 = sphi 0, %s141
      %s158 = sphi 0, %s142
      %s164 = sphi 0, %s166
      %s167 = sphi 0, %s164
      %s168 = sphi 0, %s167
      %s184 = sphi 0, %s168
      %s190 = sphi 0, %s192
      %s193 = sphi 0, %s190
      %s194 = sphi 0, %s193
      %s210 = sphi 0, %s194
      %s216 = sphi 0, %s218
      %s219 = sphi 0, %s216
      %s220 = sphi 0, %s219
      %s236 = sphi 0, %s220
      %s242 = sphi 0, %s244
      %s245 = sphi 0, %s242
      %s246 = sphi 0, %s245
      %s262 = sphi 0, %s246
      %s268 = sphi 0, %s270
      %s271 = sphi 0, %s268
      %s272 = sphi 0, %s271
      %s288 = sphi 0, %s272
      %s292 = sphi 0, %s292
      %s294 = sphi 0, %s292
      %s295 = sphi 0, %s294
      %s309 = sphi 0, %s295
    $region4: #{tpu_custom_call.1} parent=1 // loop_header_branch
      %26 = sbr.rel (%p24) target = $region8
    $region5: #{tpu_custom_call.1} parent=1 // loop_body
      %s28 = ssub.s32 %s23, 1
      %s29 = ssub.s32 %s23, 2
      %s30 = sadd.s32 %s23, 1
      %s32 = sadd.s32 %s31, 1
      %p35 = scmp.eq.s32.totalorder %s23, 1
      %p36 = scmp.ne.s32.totalorder %s31, %s33
      %p37 = scmp.eq.s32.totalorder %s23, 0
      %p38 = por %p36, %p37
      %p39 = scmp.ne.s32.totalorder %s31, %s33
      %p40 = scmp.eq.s32.totalorder %s28, 1
      %p41 = por %p39, %p40
      %p42 = scmp.ne.s32.totalorder %s33, %s34
      %p43 = scmp.eq.s32.totalorder %s28, 0
      %p44 = por %p42, %p43
      %p45 = scmp.ne.s32.totalorder %s33, %s34
      %p46 = scmp.eq.s32.totalorder %s29, 1
      %p47 = por %p45, %p46
      %p49 = scmp.ne.s32.totalorder %s34, %s48
      %p50 = scmp.eq.s32.totalorder %s29, 0
      %p51 = por %p49, %p50
      %s53 = sadd.s32 %s52, 1
      %p56 = scmp.eq.s32.totalorder %s23, 1
      %p57 = scmp.ne.s32.totalorder %s52, %s54
      %p58 = scmp.eq.s32.totalorder %s23, 0
      %p59 = por %p57, %p58
      %p60 = scmp.ne.s32.totalorder %s52, %s54
      %p61 = scmp.eq.s32.totalorder %s28, 1
      %p62 = por %p60, %p61
      %p63 = scmp.ne.s32.totalorder %s54, %s55
      %p64 = scmp.eq.s32.totalorder %s28, 0
      %p65 = por %p63, %p64
      %p66 = scmp.ne.s32.totalorder %s54, %s55
      %p67 = scmp.eq.s32.totalorder %s29, 1
      %p68 = por %p66, %p67
      %p70 = scmp.ne.s32.totalorder %s55, %s69
      %p71 = scmp.eq.s32.totalorder %s29, 0
      %p72 = por %p70, %p71
      %s74 = sadd.s32 %s73, 1
      %p77 = scmp.eq.s32.totalorder %s23, 1
      %p78 = scmp.ne.s32.totalorder %s73, %s75
      %p79 = scmp.eq.s32.totalorder %s23, 0
      %p80 = por %p78, %p79
      %p81 = scmp.ne.s32.totalorder %s73, %s75
      %p82 = scmp.eq.s32.totalorder %s28, 1
      %p83 = por %p81, %p82
      %p84 = scmp.ne.s32.totalorder %s75, %s76
      %p85 = scmp.eq.s32.totalorder %s28, 0
      %p86 = por %p84, %p85
      %p87 = scmp.ne.s32.totalorder %s75, %s76
      %p88 = scmp.eq.s32.totalorder %s29, 1
      %p89 = por %p87, %p88
      %p91 = scmp.ne.s32.totalorder %s76, %s90
      %p92 = scmp.eq.s32.totalorder %s29, 0
      %p93 = por %p91, %p92
      %s95 = sadd.s32 %s94, 1
      %p98 = scmp.eq.s32.totalorder %s23, 1
      %p99 = scmp.ne.s32.totalorder %s94, %s96
      %p100 = scmp.eq.s32.totalorder %s23, 0
      %p101 = por %p99, %p100
      %p102 = scmp.ne.s32.totalorder %s94, %s96
      %p103 = scmp.eq.s32.totalorder %s28, 1
      %p104 = por %p102, %p103
      %p105 = scmp.ne.s32.totalorder %s96, %s97
      %p106 = scmp.eq.s32.totalorder %s28, 0
      %p107 = por %p105, %p106
      %p108 = scmp.ne.s32.totalorder %s96, %s97
      %p109 = scmp.eq.s32.totalorder %s29, 1
      %p110 = por %p108, %p109
      %p112 = scmp.ne.s32.totalorder %s97, %s111
      %p113 = scmp.eq.s32.totalorder %s29, 0
      %p114 = por %p112, %p113
      %s116 = sadd.s32 %s115, 1
      %p119 = scmp.eq.s32.totalorder %s23, 1
      %p120 = scmp.ne.s32.totalorder %s115, %s117
      %p121 = scmp.eq.s32.totalorder %s23, 0
      %p122 = por %p120, %p121
      %p123 = scmp.ne.s32.totalorder %s115, %s117
      %p124 = scmp.eq.s32.totalorder %s28, 1
      %p125 = por %p123, %p124
      %p126 = scmp.ne.s32.totalorder %s117, %s118
      %p127 = scmp.eq.s32.totalorder %s28, 0
      %p128 = por %p126, %p127
      %p129 = scmp.ne.s32.totalorder %s117, %s118
      %p130 = scmp.eq.s32.totalorder %s29, 1
      %p131 = por %p129, %p130
      %p133 = scmp.ne.s32.totalorder %s118, %s132
      %p134 = scmp.eq.s32.totalorder %s29, 0
      %p135 = por %p133, %p134
      %s136 = ssub.s32 %s23, %s30
      %p137 = scmp.eq.s32.totalorder %s136, 0
      %s139 = sadd.s32 %s138, 1
      %s140 = scalar_select %p137, %s138, %s139
      %p143 = pneg %p137
      %p144 = scmp.eq.s32.totalorder %s23, 1
      %p145 = por %p143, %p144
      %p146 = scmp.ne.s32.totalorder %s138, %s141
      %p147 = scmp.eq.s32.totalorder %s23, 0
      %p148 = por %p146, %p147
      %p149 = scmp.ne.s32.totalorder %s138, %s141
      %p150 = scmp.eq.s32.totalorder %s28, 1
      %p151 = por %p149, %p150
      %p152 = scmp.ne.s32.totalorder %s141, %s142
      %p153 = scmp.eq.s32.totalorder %s28, 0
      %p154 = por %p152, %p153
      %p155 = scmp.ne.s32.totalorder %s141, %s142
      %p156 = scmp.eq.s32.totalorder %s29, 1
      %p157 = por %p155, %p156
      %p159 = scmp.ne.s32.totalorder %s142, %s158
      %p160 = scmp.eq.s32.totalorder %s29, 0
      %p161 = por %p159, %p160
      %s162 = ssub.s32 %s23, %s30
      %p163 = scmp.eq.s32.totalorder %s162, 0
      %s165 = sadd.s32 %s164, 1
      %s166 = scalar_select %p163, %s164, %s165
      %p169 = pneg %p163
      %p170 = scmp.eq.s32.totalorder %s23, 1
      %p171 = por %p169, %p170
      %p172 = scmp.ne.s32.totalorder %s164, %s167
      %p173 = scmp.eq.s32.totalorder %s23, 0
      %p174 = por %p172, %p173
      %p175 = scmp.ne.s32.totalorder %s164, %s167
      %p176 = scmp.eq.s32.totalorder %s28, 1
      %p177 = por %p175, %p176
      %p178 = scmp.ne.s32.totalorder %s167, %s168
      %p179 = scmp.eq.s32.totalorder %s28, 0
      %p180 = por %p178, %p179
      %p181 = scmp.ne.s32.totalorder %s167, %s168
      %p182 = scmp.eq.s32.totalorder %s29, 1
      %p183 = por %p181, %p182
      %p185 = scmp.ne.s32.totalorder %s168, %s184
      %p186 = scmp.eq.s32.totalorder %s29, 0
      %p187 = por %p185, %p186
      %s188 = ssub.s32 %s23, %s30
      %p189 = scmp.eq.s32.totalorder %s188, 0
      %s191 = sadd.s32 %s190, 1
      %s192 = scalar_select %p189, %s190, %s191
      %p195 = pneg %p189
      %p196 = scmp.eq.s32.totalorder %s23, 1
      %p197 = por %p195, %p196
      %p198 = scmp.ne.s32.totalorder %s190, %s193
      %p199 = scmp.eq.s32.totalorder %s23, 0
      %p200 = por %p198, %p199
      %p201 = scmp.ne.s32.totalorder %s190, %s193
      %p202 = scmp.eq.s32.totalorder %s28, 1
      %p203 = por %p201, %p202
      %p204 = scmp.ne.s32.totalorder %s193, %s194
      %p205 = scmp.eq.s32.totalorder %s28, 0
      %p206 = por %p204, %p205
      %p207 = scmp.ne.s32.totalorder %s193, %s194
      %p208 = scmp.eq.s32.totalorder %s29, 1
      %p209 = por %p207, %p208
      %p211 = scmp.ne.s32.totalorder %s194, %s210
      %p212 = scmp.eq.s32.totalorder %s29, 0
      %p213 = por %p211, %p212
      %s214 = ssub.s32 %s23, %s30
      %p215 = scmp.eq.s32.totalorder %s214, 0
      %s217 = sadd.s32 %s216, 1
      %s218 = scalar_select %p215, %s216, %s217
      %p221 = pneg %p215
      %p222 = scmp.eq.s32.totalorder %s23, 1
      %p223 = por %p221, %p222
      %p224 = scmp.ne.s32.totalorder %s216, %s219
      %p225 = scmp.eq.s32.totalorder %s23, 0
      %p226 = por %p224, %p225
      %p227 = scmp.ne.s32.totalorder %s216, %s219
      %p228 = scmp.eq.s32.totalorder %s28, 1
      %p229 = por %p227, %p228
      %p230 = scmp.ne.s32.totalorder %s219, %s220
      %p231 = scmp.eq.s32.totalorder %s28, 0
      %p232 = por %p230, %p231
      %p233 = scmp.ne.s32.totalorder %s219, %s220
      %p234 = scmp.eq.s32.totalorder %s29, 1
      %p235 = por %p233, %p234
      %p237 = scmp.ne.s32.totalorder %s220, %s236
      %p238 = scmp.eq.s32.totalorder %s29, 0
      %p239 = por %p237, %p238
      %s240 = ssub.s32 %s23, %s30
      %p241 = scmp.eq.s32.totalorder %s240, 0
      %s243 = sadd.s32 %s242, 1
      %s244 = scalar_select %p241, %s242, %s243
      %p247 = pneg %p241
      %p248 = scmp.eq.s32.totalorder %s23, 1
      %p249 = por %p247, %p248
      %p250 = scmp.ne.s32.totalorder %s242, %s245
      %p251 = scmp.eq.s32.totalorder %s23, 0
      %p252 = por %p250, %p251
      %p253 = scmp.ne.s32.totalorder %s242, %s245
      %p254 = scmp.eq.s32.totalorder %s28, 1
      %p255 = por %p253, %p254
      %p256 = scmp.ne.s32.totalorder %s245, %s246
      %p257 = scmp.eq.s32.totalorder %s28, 0
      %p258 = por %p256, %p257
      %p259 = scmp.ne.s32.totalorder %s245, %s246
      %p260 = scmp.eq.s32.totalorder %s29, 1
      %p261 = por %p259, %p260
      %p263 = scmp.ne.s32.totalorder %s246, %s262
      %p264 = scmp.eq.s32.totalorder %s29, 0
      %p265 = por %p263, %p264
      %s266 = ssub.s32 %s23, %s30
      %p267 = scmp.eq.s32.totalorder %s266, 0
      %s269 = sadd.s32 %s268, 1
      %s270 = scalar_select %p267, %s268, %s269
      %p273 = pneg %p267
      %p274 = scmp.eq.s32.totalorder %s23, 1
      %p275 = por %p273, %p274
      %p276 = scmp.ne.s32.totalorder %s268, %s271
      %p277 = scmp.eq.s32.totalorder %s23, 0
      %p278 = por %p276, %p277
      %p279 = scmp.ne.s32.totalorder %s268, %s271
      %p280 = scmp.eq.s32.totalorder %s28, 1
      %p281 = por %p279, %p280
      %p282 = scmp.ne.s32.totalorder %s271, %s272
      %p283 = scmp.eq.s32.totalorder %s28, 0
      %p284 = por %p282, %p283
      %p285 = scmp.ne.s32.totalorder %s271, %s272
      %p286 = scmp.eq.s32.totalorder %s29, 1
      %p287 = por %p285, %p286
      %p289 = scmp.ne.s32.totalorder %s272, %s288
      %p290 = scmp.eq.s32.totalorder %s29, 0
      %p291 = por %p289, %p290
      %s293 = sadd.s32 %s292, 1
      %p296 = scmp.eq.s32.totalorder %s23, 1
      %p297 = scmp.ne.s32.totalorder %s292, %s294
      %p298 = scmp.eq.s32.totalorder %s23, 0
      %p299 = por %p297, %p298
      %p300 = scmp.ne.s32.totalorder %s292, %s294
      %p301 = scmp.eq.s32.totalorder %s28, 1
      %p302 = por %p300, %p301
      %p303 = scmp.ne.s32.totalorder %s294, %s295
      %p304 = scmp.eq.s32.totalorder %s28, 0
      %p305 = por %p303, %p304
      %p306 = scmp.ne.s32.totalorder %s294, %s295
      %p307 = scmp.eq.s32.totalorder %s29, 1
      %p308 = por %p306, %p307
      %p310 = scmp.ne.s32.totalorder %s295, %s309
      %p311 = scmp.eq.s32.totalorder %s29, 0
      %p312 = por %p310, %p311
      %p313 = scmp.le.s32.totalorder 1, %s23
      %p314 = scmp.lt.s32.totalorder %s23, 3
      %p315 = pnand %p313, %p314
      %p316 = pneg %p315
      // Predicated region
      $region9: #{tpu_custom_call.1} parent=5 // pred_check
        _
      $region10: #{tpu_custom_call.1} parent=5 // pred_check_branch
        %318 = sbr.rel (%p315) target = $region12
      $region11: #{tpu_custom_call.1} parent=5 // pred_region
        %s319 = ssub.s32 %s23, 1
        // Predicated region
        $region13: #{tpu_custom_call.1} parent=11 // pred_check
          %p320 = pneg %p44
        $region14: #{tpu_custom_call.1} parent=11 // pred_check_branch
          %322 = sbr.rel (%p320) target = $region16
        $region15: #{tpu_custom_call.1} parent=11 // pred_region
          %s324 = ssub.s32 256, 256
          %325 = vsyncadd [#allocation4], %s324
          %s326 = sshll.u32 [#allocation3], 4
          %s327 = int_to_ptr.vmem [resolvable:$true] %s326
          %332 = dma.hbm_to_vmem [thread:$0]  %s0, 256, %s327, [#allocation4], 128, 128, 8
        $region16: #{tpu_custom_call.1} parent=11 // pred_fallthru
          _
        // Predicated region
        $region17: #{tpu_custom_call.1} parent=11 // pred_check
          %p333 = pneg %p65
        $region18: #{tpu_custom_call.1} parent=11 // pred_check_branch
          %335 = sbr.rel (%p333) target = $region20
        $region19: #{tpu_custom_call.1} parent=11 // pred_region
          %s337 = ssub.s32 256, 256
          %338 = vsyncadd [#allocation7], %s337
          %s339 = sshll.u32 [#allocation6], 4
          %s340 = int_to_ptr.vmem [resolvable:$true] %s339
          %345 = dma.hbm_to_vmem [thread:$0]  %s1, 256, %s340, [#allocation7], 128, 128, 8
        $region20: #{tpu_custom_call.1} parent=11 // pred_fallthru
          _
        // Predicated region
        $region21: #{tpu_custom_call.1} parent=11 // pred_check
          %p346 = pneg %p86
        $region22: #{tpu_custom_call.1} parent=11 // pred_check_branch
          %348 = sbr.rel (%p346) target = $region24
        $region23: #{tpu_custom_call.1} parent=11 // pred_region
          %s350 = ssub.s32 256, 256
          %351 = vsyncadd [#allocation7], %s350
          %s352 = sshll.u32 [#allocation8], 4
          %s353 = int_to_ptr.vmem [resolvable:$true] %s352
          %358 = dma.hbm_to_vmem [thread:$0]  %s2, 256, %s353, [#allocation7], 128, 128, 8
        $region24: #{tpu_custom_call.1} parent=11 // pred_fallthru
          _
        // Predicated region
        $region25: #{tpu_custom_call.1} parent=11 // pred_check
          %p359 = pneg %p107
        $region26: #{tpu_custom_call.1} parent=11 // pred_check_branch
          %361 = sbr.rel (%p359) target = $region28
        $region27: #{tpu_custom_call.1} parent=11 // pred_region
          _
        $region28: #{tpu_custom_call.1} parent=11 // pred_fallthru
          _
        // Predicated region
        $region29: #{tpu_custom_call.1} parent=11 // pred_check
          %p362 = pneg %p128
        $region30: #{tpu_custom_call.1} parent=11 // pred_check_branch
          %364 = sbr.rel (%p362) target = $region32
        $region31: #{tpu_custom_call.1} parent=11 // pred_region
          _
        $region32: #{tpu_custom_call.1} parent=11 // pred_fallthru
          _
      $region12: #{tpu_custom_call.1} parent=5 // pred_fallthru
        _
      %p365 = scmp.lt.s32.totalorder %s23, 2
      // Predicated region
      $region33: #{tpu_custom_call.1} parent=5 // pred_check
        %p366 = pneg %p365
      $region34: #{tpu_custom_call.1} parent=5 // pred_check_branch
        %368 = sbr.rel (%p366) target = $region36
      $region35: #{tpu_custom_call.1} parent=5 // pred_region
        // Predicated region
        $region37: #{tpu_custom_call.1} parent=35 // pred_check
          %p369 = pneg %p148
        $region38: #{tpu_custom_call.1} parent=35 // pred_check_branch
          %371 = sbr.rel (%p369) target = $region40
        $region39: #{tpu_custom_call.1} parent=35 // pred_region
          %s372 = sand.u32 %s23, 1
          %s373 = scalar_lea.sflag [#allocation10], %s372
          %s374 = sand.u32 %s138, 1
          %s375 = smul.addr %s374, 16
          %s376 = scalar_lea.vmem [#allocation9], %s375
          %s378 = ssub.s32 256, 256
          %379 = vsyncadd %s373, %s378
          %s380 = smul.addr %s23, 4
          %s381 = smul.addr %s380, 64
          %s382 = scalar_lea.hbm %s5, %s381
          %s383 = sshll.u32 %s376, 4
          %s384 = int_to_ptr.vmem [resolvable:$true] %s383
          %389 = dma.hbm_to_vmem [thread:$0]  %s382, 256, %s384, %s373, 64, 64, 4
        $region40: #{tpu_custom_call.1} parent=35 // pred_fallthru
          _
        // Predicated region
        $region41: #{tpu_custom_call.1} parent=35 // pred_check
          %p390 = pneg %p174
        $region42: #{tpu_custom_call.1} parent=35 // pred_check_branch
          %392 = sbr.rel (%p390) target = $region44
        $region43: #{tpu_custom_call.1} parent=35 // pred_region
          %p393 = scmp.lt.s32.totalorder %s23, 1
          %s394 = scalar_select %p393, %s23, 1
          %s395 = scalar_lea.vmem %s6, %s394
        $region44: #{tpu_custom_call.1} parent=35 // pred_fallthru
          _
        // Predicated region
        $region45: #{tpu_custom_call.1} parent=35 // pred_check
          %p396 = pneg %p200
        $region46: #{tpu_custom_call.1} parent=35 // pred_check_branch
          %398 = sbr.rel (%p396) target = $region48
        $region47: #{tpu_custom_call.1} parent=35 // pred_region
          %s399 = sand.u32 %s23, 1
          %s400 = scalar_lea.sflag [#allocation10], %s399
          %s401 = sand.u32 %s190, 1
          %s402 = smul.addr %s401, 16
          %s403 = scalar_lea.vmem [#allocation11], %s402
          %s405 = ssub.s32 256, 256
          %406 = vsyncadd %s400, %s405
          %s407 = smul.addr %s23, 4
          %s408 = smul.addr %s407, 64
          %s409 = scalar_lea.hbm %s7, %s408
          %s410 = sshll.u32 %s403, 4
          %s411 = int_to_ptr.vmem [resolvable:$true] %s410
          %416 = dma.hbm_to_vmem [thread:$0]  %s409, 256, %s411, %s400, 64, 64, 4
        $region48: #{tpu_custom_call.1} parent=35 // pred_fallthru
          _
        // Predicated region
        $region49: #{tpu_custom_call.1} parent=35 // pred_check
          %p417 = pneg %p226
        $region50: #{tpu_custom_call.1} parent=35 // pred_check_branch
          %419 = sbr.rel (%p417) target = $region52
        $region51: #{tpu_custom_call.1} parent=35 // pred_region
          %p420 = scmp.lt.s32.totalorder %s23, 1
          %s421 = scalar_select %p420, %s23, 1
          %s422 = scalar_lea.vmem %s8, %s421
        $region52: #{tpu_custom_call.1} parent=35 // pred_fallthru
          _
        // Predicated region
        $region53: #{tpu_custom_call.1} parent=35 // pred_check
          %p423 = pneg %p252
        $region54: #{tpu_custom_call.1} parent=35 // pred_check_branch
          %425 = sbr.rel (%p423) target = $region56
        $region55: #{tpu_custom_call.1} parent=35 // pred_region
          %p426 = scmp.lt.s32.totalorder %s23, 1
          %s427 = scalar_select %p426, %s23, 1
          %s428 = scalar_lea.vmem %s9, %s427
        $region56: #{tpu_custom_call.1} parent=35 // pred_fallthru
          _
        // Predicated region
        $region57: #{tpu_custom_call.1} parent=35 // pred_check
          %p429 = pneg %p278
        $region58: #{tpu_custom_call.1} parent=35 // pred_check_branch
          %431 = sbr.rel (%p429) target = $region60
        $region59: #{tpu_custom_call.1} parent=35 // pred_region
          %p432 = scmp.lt.s32.totalorder %s23, 1
          %s433 = scalar_select %p432, %s23, 1
          %s434 = scalar_lea.vmem %s10, %s433
        $region60: #{tpu_custom_call.1} parent=35 // pred_fallthru
          _
      $region36: #{tpu_custom_call.1} parent=5 // pred_fallthru
        _
      %p435 = scmp.le.s32.totalorder 1, %s23
      %p436 = scmp.lt.s32.totalorder %s23, 3
      %p437 = pnand %p435, %p436
      %p438 = pneg %p437
      // Predicated region
      $region61: #{tpu_custom_call.1} parent=5 // pred_check
        _
      $region62: #{tpu_custom_call.1} parent=5 // pred_check_branch
        %440 = sbr.rel (%p437) target = $region64
      $region63: #{tpu_custom_call.1} parent=5 // pred_region
        %s441 = ssub.s32 %s23, 1
        // Predicated region
        $region65: #{tpu_custom_call.1} parent=63 // pred_check
          %p442 = pneg %p44
        $region66: #{tpu_custom_call.1} parent=63 // pred_check_branch
          %444 = sbr.rel (%p442) target = $region68
        $region67: #{tpu_custom_call.1} parent=63 // pred_region
          %445 = dma.done [#allocation4], 256
        $region68: #{tpu_custom_call.1} parent=63 // pred_fallthru
          _
        // Predicated region
        $region69: #{tpu_custom_call.1} parent=63 // pred_check
          %p446 = pneg %p65
        $region70: #{tpu_custom_call.1} parent=63 // pred_check_branch
          %448 = sbr.rel (%p446) target = $region72
        $region71: #{tpu_custom_call.1} parent=63 // pred_region
          %449 = dma.done [#allocation7], 256
        $region72: #{tpu_custom_call.1} parent=63 // pred_fallthru
          _
        // Predicated region
        $region73: #{tpu_custom_call.1} parent=63 // pred_check
          %p450 = pneg %p86
        $region74: #{tpu_custom_call.1} parent=63 // pred_check_branch
          %452 = sbr.rel (%p450) target = $region76
        $region75: #{tpu_custom_call.1} parent=63 // pred_region
          %453 = dma.done [#allocation7], 256
        $region76: #{tpu_custom_call.1} parent=63 // pred_fallthru
          _
        %s454 = sand.u32 %s28, 1
        %s455 = scalar_lea.sflag [#allocation10], %s454
        %s456 = sand.u32 %s141, 1
        %s457 = smul.addr %s456, 16
        %s458 = scalar_lea.vmem [#allocation9], %s457
        // Predicated region
        $region77: #{tpu_custom_call.1} parent=63 // pred_check
          %p459 = pneg %p154
        $region78: #{tpu_custom_call.1} parent=63 // pred_check_branch
          %461 = sbr.rel (%p459) target = $region80
        $region79: #{tpu_custom_call.1} parent=63 // pred_region
          %462 = dma.done %s455, 256
        $region80: #{tpu_custom_call.1} parent=63 // pred_fallthru
          _
        %s463 = sand.u32 %s28, 1
        %s464 = scalar_lea.sflag [#allocation10], %s463
        %s465 = sand.u32 %s193, 1
        %s466 = smul.addr %s465, 16
        %s467 = scalar_lea.vmem [#allocation11], %s466
        // Predicated region
        $region81: #{tpu_custom_call.1} parent=63 // pred_check
          %p468 = pneg %p206
        $region82: #{tpu_custom_call.1} parent=63 // pred_check_branch
          %470 = sbr.rel (%p468) target = $region84
        $region83: #{tpu_custom_call.1} parent=63 // pred_region
          %471 = dma.done %s464, 256
        $region84: #{tpu_custom_call.1} parent=63 // pred_fallthru
          _
        %p472 = pneg %p44
        %p473 = pneg %p41
        %p474 = pneg %p65
        %p475 = pneg %p62
        %p476 = pneg %p86
        %p477 = pneg %p83
        %p478 = pneg %p107
        %p479 = pneg %p104
        %p480 = pneg %p128
        %p481 = pneg %p125
        %s482 = sand.u32 %s28, 1
        %s483 = scalar_lea.sflag [#allocation10], %s482
        %s484 = sand.u32 %s141, 1
        %s485 = smul.addr %s484, 16
        %s486 = scalar_lea.vmem [#allocation9], %s485
        %p487 = pneg %p154
        %p488 = pneg %p151
        %p489 = scmp.lt.s32.totalorder %s28, 1
        %s490 = scalar_select %p489, %s28, 1
        %s491 = scalar_lea.vmem %s6, %s490
        %p492 = pneg %p180
        %p493 = pneg %p177
        %s494 = sand.u32 %s28, 1
        %s495 = scalar_lea.sflag [#allocation10], %s494
        %s496 = sand.u32 %s193, 1
        %s497 = smul.addr %s496, 16
        %s498 = scalar_lea.vmem [#allocation11], %s497
        %p499 = pneg %p206
        %p500 = pneg %p203
        %p501 = scmp.lt.s32.totalorder %s28, 1
        %s502 = scalar_select %p501, %s28, 1
        %s503 = scalar_lea.vmem %s8, %s502
        %p504 = pneg %p232
        %p505 = pneg %p229
        %p506 = scmp.lt.s32.totalorder %s28, 1
        %s507 = scalar_select %p506, %s28, 1
        %s508 = scalar_lea.vmem %s9, %s507
        %p509 = pneg %p258
        %p510 = pneg %p255
        %p511 = scmp.lt.s32.totalorder %s28, 1
        %s512 = scalar_select %p511, %s28, 1
        %s513 = scalar_lea.vmem %s10, %s512
        %p514 = pneg %p284
        %p515 = pneg %p281
        %p516 = pneg %p305
        %p517 = pneg %p302
        %p518 = scmp.lt.s32.totalorder %s28, 1
        %s519 = scalar_select %p518, %s28, 1
        %s520 = scalar_lea.vmem %s6, %s519
        %p521 = scmp.lt.s32.totalorder %s28, 1
        %s522 = scalar_select %p521, %s28, 1
        %s523 = scalar_lea.vmem %s8, %s522
        %p524 = scmp.lt.s32.totalorder %s28, 1
        %s525 = scalar_select %p524, %s28, 1
        %s526 = scalar_lea.vmem %s9, %s525
        %p527 = scmp.lt.s32.totalorder %s28, 1
        %s528 = scalar_select %p527, %s28, 1
        %s529 = scalar_lea.vmem %s10, %s528
        %p531 = scmp.eq.s32.totalorder %s28, 0
        // Predicated region
        $region85: #{tpu_custom_call.1} parent=63 // pred_check
          %p532 = pneg %p531
        $region86: #{tpu_custom_call.1} parent=63 // pred_check_branch
          %534 = sbr.rel (%p532) target = $region88
        $region87: #{tpu_custom_call.1} parent=63 // pred_region
          %v535 = vld [vmem:[#allocation3] sm:$0xff]
          %v536 = vld [vmem:[#allocation3 + $0x8] sm:$0xff]
          %v537 = vld [vmem:[#allocation6] sm:$0xff]
          %v538 = vld [vmem:[#allocation6 + $0x8] sm:$0xff]
          %v539 = vadd.f32 %v535, %v537
          %v540 = vadd.f32 %v536, %v538
          %v541 = vld [vmem:[%s3] sm:$0x1]
          %v542 = vld [vmem:[%s4] sm:$0x1]
          %vm543 = vcmask 261120
          %v544 = vsel %vm543, %v539, 0.0
          %545 = vadd.xlane.f32.xlu0 %v544
          %v546 = vpop.xlane.xlu0 %545
          %v547 = vsel %vm543, %v540, 0.0
          %548 = vadd.xlane.f32.xlu0 %v547
          %v549 = vpop.xlane.xlu0 %548
          %v550 = vmul.f32 %v546, 0.03125
          %v551 = vmul.f32 %v549, 0.03125
          %v552 = vsub.f32 %v539, %v550
          %v553 = vsub.f32 %v540, %v551
          %v554 = vmul.f32 %v552, %v552
          %v555 = vmul.f32 %v553, %v553
          %v556 = vsel %vm543, %v554, 0.0
          %557 = vadd.xlane.f32.xlu0 %v556
          %v558 = vpop.xlane.xlu0 %557
          %v559 = vsel %vm543, %v555, 0.0
          %560 = vadd.xlane.f32.xlu0 %v559
          %v561 = vpop.xlane.xlu0 %560
          %v562 = vmul.f32 %v558, 0.03125
          %v563 = vmul.f32 %v561, 0.03125
          %v564 = vadd.f32 %v562, 1e-12
          %v565 = vadd.f32 %v563, 1e-12
          %v566 = vrsqrt.pop %v564
          %v567 = vrsqrt.pop %v565
          %v568 = vmul.f32 %v552, %v566
          %v569 = vmul.f32 %v553, %v567
          %v571 = vlaneseq
          %v572 = vshrl.u32 %v571, 7
          %v573 = vsub.s32 0, %v572
          %v574 = vrot.slane %v541, %v573
          %v576 = vmul.f32 %v568, %v574
          %v577 = vmul.f32 %v569, %v574
          %v579 = vlaneseq
          %v580 = vshrl.u32 %v579, 7
          %v581 = vsub.s32 0, %v580
          %v582 = vrot.slane %v542, %v581
          %v584 = vadd.f32 %v576, %v582
          %v585 = vadd.f32 %v577, %v582
          %586 = vst.msk [vmem:[#allocation2] sm:$0xff] %vm543, %v584
          %587 = vst.msk [vmem:[#allocation2 + $0x8] sm:$0xff] %vm543, %v585
        $region88: #{tpu_custom_call.1} parent=63 // pred_fallthru
          _
        %v588 = vld [vmem:[#allocation2] sm:$0xff]
        %v589 = vld [vmem:[#allocation2 + $0x8] sm:$0xff]
        %v590 = vpack.c.bf16 %v589, %v588
        %v591 = vld [vmem:[%s458] sm:$0xf]
        %v592 = vld [vmem:[%s458 + $0x4] sm:$0xf]
        %v593 = vld [vmem:[%s458 + $0x8] sm:$0xf]
        %v594 = vld [vmem:[%s458 + $0xc] sm:$0xf]
        %v595 = vld [vmem:[%s520] sm:$0x1]
        %v597 = vlaneseq
        %v598 = vshrl.u32 %v597, 7
        %v599 = vsub.s32 0, %v598
        %v600 = vrot.slane %v595, %v599
        %v606 = vunpack.c.l.b16 %v591
        %v607 = vunpack.c.l.b16 %v592
        %v608 = vunpack.c.l.b16 %v593
        %v609 = vunpack.c.l.b16 %v594
        %v610 = vpack.c.b16 %v607, %v606
        %v611 = vpack.c.b16 %v609, %v608
        %vm614 = vcmask 261120
        %v616 = vsel %vm614, %v590, 0
        %618 = vmatprep.subr.bf16.mxu0 0
        %619 = vmatpush1.bf16.msra.mxu0 %v610
        %620 = vmatprep.subr.bf16.mxu0 0
        %621 = vmatpush1.bf16.msra.mxu0 %v611
        %622 = vmatprep.subr.bf16.mxu0 0
        %623 = vmatpush1.bf16.msra.mxu0 0
        %624 = vmatprep.subr.bf16.mxu0 0
        %625 = vmatpush1.bf16.msra.mxu0 0
        %626 = vmatprep.subr.bf16.mxu0 0
        %627 = vmatpush1.bf16.msra.mxu0 0
        %628 = vmatprep.subr.bf16.mxu0 0
        %629 = vmatpush1.bf16.msra.mxu0 0
        %630 = vmatprep.subr.bf16.mxu0 0
        %631 = vmatpush1.bf16.msra.mxu0 0
        %632 = vmatprep.subr.bf16.mxu0 0
        %633 = vmatpush1.bf16.msra.mxu0 0
        %634 = vmatprep.subr.bf16.mxu0 0
        %635 = vmatpush1.bf16.msra.mxu0 0
        %636 = vmatprep.subr.bf16.mxu0 0
        %637 = vmatpush1.bf16.msra.mxu0 0
        %638 = vmatprep.subr.bf16.mxu0 0
        %639 = vmatpush1.bf16.msra.mxu0 0
        %640 = vmatprep.subr.bf16.mxu0 0
        %641 = vmatpush1.bf16.msra.mxu0 0
        %642 = vmatprep.subr.bf16.mxu0 0
        %643 = vmatpush1.bf16.msra.mxu0 0
        %644 = vmatprep.subr.bf16.mxu0 0
        %645 = vmatpush1.bf16.msra.mxu0 0
        %646 = vmatprep.subr.bf16.mxu0 0
        %647 = vmatpush1.bf16.msra.mxu0 0
        %648 = vmatprep.subr.bf16.mxu0 0
        %649 = vmatpush1.bf16.msra.mxu0 0
        %650 = vmatprep.mubr.bf16.mxu0 0
        %651 = vmatmul.mubr.bf16.gmra.mrb[0].mxu0 %v616
        %v652 = vpop.f32.mrb[0].mxu0
        %v653 = vadd.f32 %v600, %v652
        %v654 = vpop.f32.mrb[0].mxu0
        %v655 = vpop.f32.mrb[0].mxu0
        %v656 = vadd.f32 %v600, %v655
        %v657 = vpop.f32.mrb[0].mxu0
        %658 = vdwg.mxu0
        %v659 = vmul.f32 %v653, 0.17677669
        %v660 = vmul.f32 %v656, 0.17677669
        %v661 = vpack.c.bf16 %v660, %v659
        %v662 = vpack.c.bf16 %v656, %v653
        %664 = vrot.lane.b32.xlu0 %v661, 120
        %v665 = vpop.permute.xlu0 %664
        %666 = vrot.lane.b32.xlu0 %v661, 112
        %v667 = vpop.permute.xlu0 %666
        %668 = vrot.lane.b32.xlu0 %v661, 104
        %v669 = vpop.permute.xlu0 %668
        %671 = vrot.lane.b32.xlu0 %v662, 120
        %v672 = vpop.permute.xlu0 %671
        %673 = vrot.lane.b32.xlu0 %v662, 112
        %v674 = vpop.permute.xlu0 %673
        %675 = vrot.lane.b32.xlu0 %v662, 104
        %v676 = vpop.permute.xlu0 %675
        %v677 = vld [vmem:[#allocation8] sm:$0xff]
        %v678 = vld [vmem:[#allocation8 + $0x8] sm:$0xff]
        %679 = vrot.lane.b32.xlu0 %v662, 96
        %v680 = vpop.permute.xlu0 %679
        %vm681 = vcmask 64512
        %v683 = vsel %vm681, %v661, 0
        %v686 = vsel %vm681, %v680, 0
        %688 = vmatprep.subr.bf16.mxu0 0
        %689 = vmatpush1.bf16.xpose.msra.mxu0 %v686
        %690 = vmatprep.subr.bf16.mxu0 0
        %691 = vmatpush1.bf16.xpose.msra.mxu0 0
        %692 = vmatprep.subr.bf16.mxu0 0
        %693 = vmatpush1.bf16.xpose.msra.mxu0 0
        %694 = vmatprep.subr.bf16.mxu0 0
        %695 = vmatpush1.bf16.xpose.msra.mxu0 0
        %696 = vmatprep.subr.bf16.mxu0 0
        %697 = vmatpush1.bf16.xpose.msra.mxu0 0
        %698 = vmatprep.subr.bf16.mxu0 0
        %699 = vmatpush1.bf16.xpose.msra.mxu0 0
        %700 = vmatprep.subr.bf16.mxu0 0
        %701 = vmatpush1.bf16.xpose.msra.mxu0 0
        %702 = vmatprep.subr.bf16.mxu0 0
        %703 = vmatpush1.bf16.xpose.msra.mxu0 0
        %704 = vmatprep.subr.bf16.mxu0 0
        %705 = vmatpush1.bf16.xpose.msra.mxu0 0
        %706 = vmatprep.subr.bf16.mxu0 0
        %707 = vmatpush1.bf16.xpose.msra.mxu0 0
        %708 = vmatprep.subr.bf16.mxu0 0
        %709 = vmatpush1.bf16.xpose.msra.mxu0 0
        %710 = vmatprep.subr.bf16.mxu0 0
        %711 = vmatpush1.bf16.xpose.msra.mxu0 0
        %712 = vmatprep.subr.bf16.mxu0 0
        %713 = vmatpush1.bf16.xpose.msra.mxu0 0
        %714 = vmatprep.subr.bf16.mxu0 0
        %715 = vmatpush1.bf16.xpose.msra.mxu0 0
        %716 = vmatprep.subr.bf16.mxu0 0
        %717 = vmatpush1.bf16.xpose.msra.mxu0 0
        %718 = vmatprep.subr.bf16.mxu0 0
        %719 = vmatpush1.bf16.xpose.msra.mxu0 0
        %720 = vmatprep.mubr.bf16.mxu0 0
        %721 = vmatmul.mubr.bf16.gmra.mrb[0].mxu0 %v683
        %v722 = vpop.f32.mrb[0].mxu0
        %v723 = vadd.f32 %v677, %v722
        %v724 = vpop.f32.mrb[0].mxu0
        %v725 = vpop.f32.mrb[0].mxu0
        %v726 = vadd.f32 %v678, %v725
        %v727 = vpop.f32.mrb[0].mxu0
        %728 = vdwg.mxu0
        %729 = vrot.lane.b32.xlu0 %v672, 96
        %v730 = vpop.permute.xlu0 %729
        %v732 = vsel %vm681, %v665, 0
        %v735 = vsel %vm681, %v730, 0
        %737 = vmatprep.subr.bf16.mxu0 0
        %738 = vmatpush1.bf16.xpose.msra.mxu0 %v735
        %739 = vmatprep.subr.bf16.mxu0 0
        %740 = vmatpush1.bf16.xpose.msra.mxu0 0
        %741 = vmatprep.subr.bf16.mxu0 0
        %742 = vmatpush1.bf16.xpose.msra.mxu0 0
        %743 = vmatprep.subr.bf16.mxu0 0
        %744 = vmatpush1.bf16.xpose.msra.mxu0 0
        %745 = vmatprep.subr.bf16.mxu0 0
        %746 = vmatpush1.bf16.xpose.msra.mxu0 0
        %747 = vmatprep.subr.bf16.mxu0 0
        %748 = vmatpush1.bf16.xpose.msra.mxu0 0
        %749 = vmatprep.subr.bf16.mxu0 0
        %750 = vmatpush1.bf16.xpose.msra.mxu0 0
        %751 = vmatprep.subr.bf16.mxu0 0
        %752 = vmatpush1.bf16.xpose.msra.mxu0 0
        %753 = vmatprep.subr.bf16.mxu0 0
        %754 = vmatpush1.bf16.xpose.msra.mxu0 0
        %755 = vmatprep.subr.bf16.mxu0 0
        %756 = vmatpush1.bf16.xpose.msra.mxu0 0
        %757 = vmatprep.subr.bf16.mxu0 0
        %758 = vmatpush1.bf16.xpose.msra.mxu0 0
        %759 = vmatprep.subr.bf16.mxu0 0
        %760 = vmatpush1.bf16.xpose.msra.mxu0 0
        %761 = vmatprep.subr.bf16.mxu0 0
        %762 = vmatpush1.bf16.xpose.msra.mxu0 0
        %763 = vmatprep.subr.bf16.mxu0 0
        %764 = vmatpush1.bf16.xpose.msra.mxu0 0
        %765 = vmatprep.subr.bf16.mxu0 0
        %766 = vmatpush1.bf16.xpose.msra.mxu0 0
        %767 = vmatprep.subr.bf16.mxu0 0
        %768 = vmatpush1.bf16.xpose.msra.mxu0 0
        %769 = vmatprep.mubr.bf16.mxu0 0
        %770 = vmatmul.mubr.bf16.gmra.mrb[0].mxu0 %v732
        %v771 = vpop.f32.mrb[0].mxu0
        %v772 = vadd.f32 %v677, %v771
        %v773 = vpop.f32.mrb[0].mxu0
        %v774 = vpop.f32.mrb[0].mxu0
        %v775 = vadd.f32 %v678, %v774
        %v776 = vpop.f32.mrb[0].mxu0
        %777 = vdwg.mxu0
        %778 = vrot.lane.b32.xlu0 %v674, 96
        %v779 = vpop.permute.xlu0 %778
        %v781 = vsel %vm681, %v667, 0
        %v784 = vsel %vm681, %v779, 0
        %786 = vmatprep.subr.bf16.mxu0 0
        %787 = vmatpush1.bf16.xpose.msra.mxu0 %v784
        %788 = vmatprep.subr.bf16.mxu0 0
        %789 = vmatpush1.bf16.xpose.msra.mxu0 0
        %790 = vmatprep.subr.bf16.mxu0 0
        %791 = vmatpush1.bf16.xpose.msra.mxu0 0
        %792 = vmatprep.subr.bf16.mxu0 0
        %793 = vmatpush1.bf16.xpose.msra.mxu0 0
        %794 = vmatprep.subr.bf16.mxu0 0
        %795 = vmatpush1.bf16.xpose.msra.mxu0 0
        %796 = vmatprep.subr.bf16.mxu0 0
        %797 = vmatpush1.bf16.xpose.msra.mxu0 0
        %798 = vmatprep.subr.bf16.mxu0 0
        %799 = vmatpush1.bf16.xpose.msra.mxu0 0
        %800 = vmatprep.subr.bf16.mxu0 0
        %801 = vmatpush1.bf16.xpose.msra.mxu0 0
        %802 = vmatprep.subr.bf16.mxu0 0
        %803 = vmatpush1.bf16.xpose.msra.mxu0 0
        %804 = vmatprep.subr.bf16.mxu0 0
        %805 = vmatpush1.bf16.xpose.msra.mxu0 0
        %806 = vmatprep.subr.bf16.mxu0 0
        %807 = vmatpush1.bf16.xpose.msra.mxu0 0
        %808 = vmatprep.subr.bf16.mxu0 0
        %809 = vmatpush1.bf16.xpose.msra.mxu0 0
        %810 = vmatprep.subr.bf16.mxu0 0
        %811 = vmatpush1.bf16.xpose.msra.mxu0 0
        %812 = vmatprep.subr.bf16.mxu0 0
        %813 = vmatpush1.bf16.xpose.msra.mxu0 0
        %814 = vmatprep.subr.bf16.mxu0 0
        %815 = vmatpush1.bf16.xpose.msra.mxu0 0
        %816 = vmatprep.subr.bf16.mxu0 0
        %817 = vmatpush1.bf16.xpose.msra.mxu0 0
        %818 = vmatprep.mubr.bf16.mxu0 0
        %819 = vmatmul.mubr.bf16.gmra.mrb[0].mxu0 %v781
        %v820 = vpop.f32.mrb[0].mxu0
        %v821 = vadd.f32 %v677, %v820
        %v822 = vpop.f32.mrb[0].mxu0
        %v823 = vpop.f32.mrb[0].mxu0
        %v824 = vadd.f32 %v678, %v823
        %v825 = vpop.f32.mrb[0].mxu0
        %826 = vdwg.mxu0
        %827 = vrot.lane.b32.xlu0 %v676, 96
        %v828 = vpop.permute.xlu0 %827
        %v830 = vsel %vm681, %v669, 0
        %v833 = vsel %vm681, %v828, 0
        %835 = vmatprep.subr.bf16.mxu0 0
        %836 = vmatpush1.bf16.xpose.msra.mxu0 %v833
        %837 = vmatprep.subr.bf16.mxu0 0
        %838 = vmatpush1.bf16.xpose.msra.mxu0 0
        %839 = vmatprep.subr.bf16.mxu0 0
        %840 = vmatpush1.bf16.xpose.msra.mxu0 0
        %841 = vmatprep.subr.bf16.mxu0 0
        %842 = vmatpush1.bf16.xpose.msra.mxu0 0
        %843 = vmatprep.subr.bf16.mxu0 0
        %844 = vmatpush1.bf16.xpose.msra.mxu0 0
        %845 = vmatprep.subr.bf16.mxu0 0
        %846 = vmatpush1.bf16.xpose.msra.mxu0 0
        %847 = vmatprep.subr.bf16.mxu0 0
        %848 = vmatpush1.bf16.xpose.msra.mxu0 0
        %849 = vmatprep.subr.bf16.mxu0 0
        %850 = vmatpush1.bf16.xpose.msra.mxu0 0
        %851 = vmatprep.subr.bf16.mxu0 0
        %852 = vmatpush1.bf16.xpose.msra.mxu0 0
        %853 = vmatprep.subr.bf16.mxu0 0
        %854 = vmatpush1.bf16.xpose.msra.mxu0 0
        %855 = vmatprep.subr.bf16.mxu0 0
        %856 = vmatpush1.bf16.xpose.msra.mxu0 0
        %857 = vmatprep.subr.bf16.mxu0 0
        %858 = vmatpush1.bf16.xpose.msra.mxu0 0
        %859 = vmatprep.subr.bf16.mxu0 0
        %860 = vmatpush1.bf16.xpose.msra.mxu0 0
        %861 = vmatprep.subr.bf16.mxu0 0
        %862 = vmatpush1.bf16.xpose.msra.mxu0 0
        %863 = vmatprep.subr.bf16.mxu0 0
        %864 = vmatpush1.bf16.xpose.msra.mxu0 0
        %865 = vmatprep.subr.bf16.mxu0 0
        %866 = vmatpush1.bf16.xpose.msra.mxu0 0
        %867 = vmatprep.mubr.bf16.mxu0 0
        %868 = vmatmul.mubr.bf16.gmra.mrb[0].mxu0 %v830
        %v869 = vpop.f32.mrb[0].mxu0
        %v870 = vadd.f32 %v677, %v869
        %v871 = vpop.f32.mrb[0].mxu0
        %v872 = vpop.f32.mrb[0].mxu0
        %v873 = vadd.f32 %v678, %v872
        %v874 = vpop.f32.mrb[0].mxu0
        %875 = vdwg.mxu0
        %vm876 = vcmask 130048
        %v877 = vsel %vm876, %v723, -inf
        %878 = vmax.xlane.f32.xlu0 %v877
        %v879 = vpop.xlane.xlu0 %878
        %v880 = vsel %vm876, %v726, -inf
        %881 = vmax.xlane.f32.xlu0 %v880
        %v882 = vpop.xlane.xlu0 %881
        %v883 = vsel %vm876, %v772, -inf
        %884 = vmax.xlane.f32.xlu0 %v883
        %v885 = vpop.xlane.xlu0 %884
        %v886 = vsel %vm876, %v775, -inf
        %887 = vmax.xlane.f32.xlu0 %v886
        %v888 = vpop.xlane.xlu0 %887
        %v889 = vsel %vm876, %v821, -inf
        %890 = vmax.xlane.f32.xlu0 %v889
        %v891 = vpop.xlane.xlu0 %890
        %v892 = vsel %vm876, %v824, -inf
        %893 = vmax.xlane.f32.xlu0 %v892
        %v894 = vpop.xlane.xlu0 %893
        %v895 = vsel %vm876, %v870, -inf
        %896 = vmax.xlane.f32.xlu0 %v895
        %v897 = vpop.xlane.xlu0 %896
        %v898 = vsel %vm876, %v873, -inf
        %899 = vmax.xlane.f32.xlu0 %v898
        %v900 = vpop.xlane.xlu0 %899
        %v901 = vsub.f32 %v723, %v879
        %v902 = vsub.f32 %v726, %v882
        %v903 = vsub.f32 %v772, %v885
        %v904 = vsub.f32 %v775, %v888
        %v905 = vsub.f32 %v821, %v891
        %v906 = vsub.f32 %v824, %v894
        %v907 = vsub.f32 %v870, %v897
        %v908 = vsub.f32 %v873, %v900
        %v909 = vmul.f32 %v901, 1.442695
        %v910 = vpow.pop %v909
        %v911 = vmul.f32 %v902, 1.442695
        %v912 = vpow.pop %v911
        %v913 = vmul.f32 %v903, 1.442695
        %v914 = vpow.pop %v913
        %v915 = vmul.f32 %v904, 1.442695
        %v916 = vpow.pop %v915
        %v917 = vmul.f32 %v905, 1.442695
        %v918 = vpow.pop %v917
        %v919 = vmul.f32 %v906, 1.442695
        %v920 = vpow.pop %v919
        %v921 = vmul.f32 %v907, 1.442695
        %v922 = vpow.pop %v921
        %v923 = vmul.f32 %v908, 1.442695
        %v924 = vpow.pop %v923
        %v925 = vsel %vm876, %v910, 0.0
        %926 = vadd.xlane.f32.xlu0 %v925
        %v927 = vpop.xlane.xlu0 %926
        %v928 = vsel %vm876, %v912, 0.0
        %929 = vadd.xlane.f32.xlu0 %v928
        %v930 = vpop.xlane.xlu0 %929
        %v931 = vsel %vm876, %v914, 0.0
        %932 = vadd.xlane.f32.xlu0 %v931
        %v933 = vpop.xlane.xlu0 %932
        %v934 = vsel %vm876, %v916, 0.0
        %935 = vadd.xlane.f32.xlu0 %v934
        %v936 = vpop.xlane.xlu0 %935
        %v937 = vsel %vm876, %v918, 0.0
        %938 = vadd.xlane.f32.xlu0 %v937
        %v939 = vpop.xlane.xlu0 %938
        %v940 = vsel %vm876, %v920, 0.0
        %941 = vadd.xlane.f32.xlu0 %v940
        %v942 = vpop.xlane.xlu0 %941
        %v943 = vsel %vm876, %v922, 0.0
        %944 = vadd.xlane.f32.xlu0 %v943
        %v945 = vpop.xlane.xlu0 %944
        %v946 = vsel %vm876, %v924, 0.0
        %947 = vadd.xlane.f32.xlu0 %v946
        %v948 = vpop.xlane.xlu0 %947
        %v949 = vrcp.pop %v927
        %v950 = vrcp.pop %v930
        %v951 = vrcp.pop %v933
        %v952 = vrcp.pop %v936
        %v953 = vrcp.pop %v939
        %v954 = vrcp.pop %v942
        %v955 = vrcp.pop %v945
        %v956 = vrcp.pop %v948
        %v957 = vmul.f32 %v910, %v949
        %v958 = vmul.f32 %v912, %v950
        %v959 = vmul.f32 %v914, %v951
        %v960 = vmul.f32 %v916, %v952
        %v961 = vmul.f32 %v918, %v953
        %v962 = vmul.f32 %v920, %v954
        %v963 = vmul.f32 %v922, %v955
        %v964 = vmul.f32 %v924, %v956
        %v965 = vpack.c.bf16 %v958, %v957
        %v966 = vpack.c.bf16 %v960, %v959
        %v967 = vpack.c.bf16 %v962, %v961
        %v968 = vpack.c.bf16 %v964, %v963
        %969 = vrot.lane.b32.xlu0 %v662, 64
        %v970 = vpop.permute.xlu0 %969
        %v973 = vsel %vm876, %v965, 0
        %975 = vmatprep.subr.bf16.mxu0 0
        %976 = vmatpush1.bf16.msra.mxu0 %v970
        %977 = vmatprep.subr.bf16.mxu0 0
        %978 = vmatpush1.bf16.msra.mxu0 0
        %979 = vmatprep.subr.bf16.mxu0 0
        %980 = vmatpush1.bf16.msra.mxu0 0
        %981 = vmatprep.subr.bf16.mxu0 0
        %982 = vmatpush1.bf16.msra.mxu0 0
        %983 = vmatprep.subr.bf16.mxu0 0
        %984 = vmatpush1.bf16.msra.mxu0 0
        %985 = vmatprep.subr.bf16.mxu0 0
        %986 = vmatpush1.bf16.msra.mxu0 0
        %987 = vmatprep.subr.bf16.mxu0 0
        %988 = vmatpush1.bf16.msra.mxu0 0
        %989 = vmatprep.subr.bf16.mxu0 0
        %990 = vmatpush1.bf16.msra.mxu0 0
        %991 = vmatprep.subr.bf16.mxu0 0
        %992 = vmatpush1.bf16.msra.mxu0 0
        %993 = vmatprep.subr.bf16.mxu0 0
        %994 = vmatpush1.bf16.msra.mxu0 0
        %995 = vmatprep.subr.bf16.mxu0 0
        %996 = vmatpush1.bf16.msra.mxu0 0
        %997 = vmatprep.subr.bf16.mxu0 0
        %998 = vmatpush1.bf16.msra.mxu0 0
        %999 = vmatprep.subr.bf16.mxu0 0
        %1000 = vmatpush1.bf16.msra.mxu0 0
        %1001 = vmatprep.subr.bf16.mxu0 0
        %1002 = vmatpush1.bf16.msra.mxu0 0
        %1003 = vmatprep.subr.bf16.mxu0 0
        %1004 = vmatpush1.bf16.msra.mxu0 0
        %1005 = vmatprep.subr.bf16.mxu0 0
        %1006 = vmatpush1.bf16.msra.mxu0 0
        %1007 = vmatprep.mubr.bf16.mxu0 0
        %1008 = vmatmul.mubr.bf16.gmra.mrb[0].mxu0 %v973
        %v1009 = vpop.f32.mrb[0].mxu0
        %v1010 = vadd.f32 0.0, %v1009
        %v1011 = vpop.f32.mrb[0].mxu0
        %v1012 = vpop.f32.mrb[0].mxu0
        %v1013 = vadd.f32 0.0, %v1012
        %v1014 = vpop.f32.mrb[0].mxu0
        %1015 = vdwg.mxu0
        %1016 = vrot.lane.b32.xlu0 %v672, 64
        %v1017 = vpop.permute.xlu0 %1016
        %v1020 = vsel %vm876, %v966, 0
        %1022 = vmatprep.subr.bf16.mxu0 0
        %1023 = vmatpush1.bf16.msra.mxu0 %v1017
        %1024 = vmatprep.subr.bf16.mxu0 0
        %1025 = vmatpush1.bf16.msra.mxu0 0
        %1026 = vmatprep.subr.bf16.mxu0 0
        %1027 = vmatpush1.bf16.msra.mxu0 0
        %1028 = vmatprep.subr.bf16.mxu0 0
        %1029 = vmatpush1.bf16.msra.mxu0 0
        %1030 = vmatprep.subr.bf16.mxu0 0
        %1031 = vmatpush1.bf16.msra.mxu0 0
        %1032 = vmatprep.subr.bf16.mxu0 0
        %1033 = vmatpush1.bf16.msra.mxu0 0
        %1034 = vmatprep.subr.bf16.mxu0 0
        %1035 = vmatpush1.bf16.msra.mxu0 0
        %1036 = vmatprep.subr.bf16.mxu0 0
        %1037 = vmatpush1.bf16.msra.mxu0 0
        %1038 = vmatprep.subr.bf16.mxu0 0
        %1039 = vmatpush1.bf16.msra.mxu0 0
        %1040 = vmatprep.subr.bf16.mxu0 0
        %1041 = vmatpush1.bf16.msra.mxu0 0
        %1042 = vmatprep.subr.bf16.mxu0 0
        %1043 = vmatpush1.bf16.msra.mxu0 0
        %1044 = vmatprep.subr.bf16.mxu0 0
        %1045 = vmatpush1.bf16.msra.mxu0 0
        %1046 = vmatprep.subr.bf16.mxu0 0
        %1047 = vmatpush1.bf16.msra.mxu0 0
        %1048 = vmatprep.subr.bf16.mxu0 0
        %1049 = vmatpush1.bf16.msra.mxu0 0
        %1050 = vmatprep.subr.bf16.mxu0 0
        %1051 = vmatpush1.bf16.msra.mxu0 0
        %1052 = vmatprep.subr.bf16.mxu0 0
        %1053 = vmatpush1.bf16.msra.mxu0 0
        %1054 = vmatprep.mubr.bf16.mxu0 0
        %1055 = vmatmul.mubr.bf16.gmra.mrb[0].mxu0 %v1020
        %v1056 = vpop.f32.mrb[0].mxu0
        %v1057 = vadd.f32 0.0, %v1056
        %v1058 = vpop.f32.mrb[0].mxu0
        %v1059 = vpop.f32.mrb[0].mxu0
        %v1060 = vadd.f32 0.0, %v1059
        %v1061 = vpop.f32.mrb[0].mxu0
        %1062 = vdwg.mxu0
        %1063 = vrot.lane.b32.xlu0 %v674, 64
        %v1064 = vpop.permute.xlu0 %1063
        %v1067 = vsel %vm876, %v967, 0
        %1069 = vmatprep.subr.bf16.mxu0 0
        %1070 = vmatpush1.bf16.msra.mxu0 %v1064
        %1071 = vmatprep.subr.bf16.mxu0 0
        %1072 = vmatpush1.bf16.msra.mxu0 0
        %1073 = vmatprep.subr.bf16.mxu0 0
        %1074 = vmatpush1.bf16.msra.mxu0 0
        %1075 = vmatprep.subr.bf16.mxu0 0
        %1076 = vmatpush1.bf16.msra.mxu0 0
        %1077 = vmatprep.subr.bf16.mxu0 0
        %1078 = vmatpush1.bf16.msra.mxu0 0
        %1079 = vmatprep.subr.bf16.mxu0 0
        %1080 = vmatpush1.bf16.msra.mxu0 0
        %1081 = vmatprep.subr.bf16.mxu0 0
        %1082 = vmatpush1.bf16.msra.mxu0 0
        %1083 = vmatprep.subr.bf16.mxu0 0
        %1084 = vmatpush1.bf16.msra.mxu0 0
        %1085 = vmatprep.subr.bf16.mxu0 0
        %1086 = vmatpush1.bf16.msra.mxu0 0
        %1087 = vmatprep.subr.bf16.mxu0 0
        %1088 = vmatpush1.bf16.msra.mxu0 0
        %1089 = vmatprep.subr.bf16.mxu0 0
        %1090 = vmatpush1.bf16.msra.mxu0 0
        %1091 = vmatprep.subr.bf16.mxu0 0
        %1092 = vmatpush1.bf16.msra.mxu0 0
        %1093 = vmatprep.subr.bf16.mxu0 0
        %1094 = vmatpush1.bf16.msra.mxu0 0
        %1095 = vmatprep.subr.bf16.mxu0 0
        %1096 = vmatpush1.bf16.msra.mxu0 0
        %1097 = vmatprep.subr.bf16.mxu0 0
        %1098 = vmatpush1.bf16.msra.mxu0 0
        %1099 = vmatprep.subr.bf16.mxu0 0
        %1100 = vmatpush1.bf16.msra.mxu0 0
        %1101 = vmatprep.mubr.bf16.mxu0 0
        %1102 = vmatmul.mubr.bf16.gmra.mrb[0].mxu0 %v1067
        %v1103 = vpop.f32.mrb[0].mxu0
        %v1104 = vadd.f32 0.0, %v1103
        %v1105 = vpop.f32.mrb[0].mxu0
        %v1106 = vpop.f32.mrb[0].mxu0
        %v1107 = vadd.f32 0.0, %v1106
        %v1108 = vpop.f32.mrb[0].mxu0
        %1109 = vdwg.mxu0
        %1110 = vrot.lane.b32.xlu0 %v676, 64
        %v1111 = vpop.permute.xlu0 %1110
        %v1114 = vsel %vm876, %v968, 0
        %1116 = vmatprep.subr.bf16.mxu0 0
        %1117 = vmatpush1.bf16.msra.mxu0 %v1111
        %1118 = vmatprep.subr.bf16.mxu0 0
        %1119 = vmatpush1.bf16.msra.mxu0 0
        %1120 = vmatprep.subr.bf16.mxu0 0
        %1121 = vmatpush1.bf16.msra.mxu0 0
        %1122 = vmatprep.subr.bf16.mxu0 0
        %1123 = vmatpush1.bf16.msra.mxu0 0
        %1124 = vmatprep.subr.bf16.mxu0 0
        %1125 = vmatpush1.bf16.msra.mxu0 0
        %1126 = vmatprep.subr.bf16.mxu0 0
        %1127 = vmatpush1.bf16.msra.mxu0 0
        %1128 = vmatprep.subr.bf16.mxu0 0
        %1129 = vmatpush1.bf16.msra.mxu0 0
        %1130 = vmatprep.subr.bf16.mxu0 0
        %1131 = vmatpush1.bf16.msra.mxu0 0
        %1132 = vmatprep.subr.bf16.mxu0 0
        %1133 = vmatpush1.bf16.msra.mxu0 0
        %1134 = vmatprep.subr.bf16.mxu0 0
        %1135 = vmatpush1.bf16.msra.mxu0 0
        %1136 = vmatprep.subr.bf16.mxu0 0
        %1137 = vmatpush1.bf16.msra.mxu0 0
        %1138 = vmatprep.subr.bf16.mxu0 0
        %1139 = vmatpush1.bf16.msra.mxu0 0
        %1140 = vmatprep.subr.bf16.mxu0 0
        %1141 = vmatpush1.bf16.msra.mxu0 0
        %1142 = vmatprep.subr.bf16.mxu0 0
        %1143 = vmatpush1.bf16.msra.mxu0 0
        %1144 = vmatprep.subr.bf16.mxu0 0
        %1145 = vmatpush1.bf16.msra.mxu0 0
        %1146 = vmatprep.subr.bf16.mxu0 0
        %1147 = vmatpush1.bf16.msra.mxu0 0
        %1148 = vmatprep.mubr.bf16.mxu0 0
        %1149 = vmatmul.mubr.bf16.gmra.mrb[0].mxu0 %v1114
        %v1150 = vpop.f32.mrb[0].mxu0
        %v1151 = vadd.f32 0.0, %v1150
        %v1152 = vpop.f32.mrb[0].mxu0
        %v1153 = vpop.f32.mrb[0].mxu0
        %v1154 = vadd.f32 0.0, %v1153
        %v1155 = vpop.f32.mrb[0].mxu0
        %1156 = vdwg.mxu0
        %v1157 = vpack.c.bf16 %v1013, %v1010
        %v1158 = vpack.c.bf16 %v1060, %v1057
        %v1159 = vpack.c.bf16 %v1107, %v1104
        %v1160 = vpack.c.bf16 %v1154, %v1151
        %v1161 = vld [vmem:[%s467] sm:$0xf]
        %v1162 = vld [vmem:[%s467 + $0x4] sm:$0xf]
        %v1163 = vld [vmem:[%s467 + $0x8] sm:$0xf]
        %v1164 = vld [vmem:[%s467 + $0xc] sm:$0xf]
        %v1166 = vsel %vm681, %v1157, 0
        %vm1168 = vcmask 1043456
        %v1170 = vsel %vm1168, %v1161, 0
        %1172 = vmatprep.subr.bf16.mxu0 0
        %1173 = vmatpush1.bf16.msra.mxu0 %v1170
        %1174 = vmatprep.subr.bf16.mxu0 0
        %1175 = vmatpush1.bf16.msra.mxu0 0
        %1176 = vmatprep.subr.bf16.mxu0 0
        %1177 = vmatpush1.bf16.msra.mxu0 0
        %1178 = vmatprep.subr.bf16.mxu0 0
        %1179 = vmatpush1.bf16.msra.mxu0 0
        %1180 = vmatprep.subr.bf16.mxu0 0
        %1181 = vmatpush1.bf16.msra.mxu0 0
        %1182 = vmatprep.subr.bf16.mxu0 0
        %1183 = vmatpush1.bf16.msra.mxu0 0
        %1184 = vmatprep.subr.bf16.mxu0 0
        %1185 = vmatpush1.bf16.msra.mxu0 0
        %1186 = vmatprep.subr.bf16.mxu0 0
        %1187 = vmatpush1.bf16.msra.mxu0 0
        %1188 = vmatprep.subr.bf16.mxu0 0
        %1189 = vmatpush1.bf16.msra.mxu0 0
        %1190 = vmatprep.subr.bf16.mxu0 0
        %1191 = vmatpush1.bf16.msra.mxu0 0
        %1192 = vmatprep.subr.bf16.mxu0 0
        %1193 = vmatpush1.bf16.msra.mxu0 0
        %1194 = vmatprep.subr.bf16.mxu0 0
        %1195 = vmatpush1.bf16.msra.mxu0 0
        %1196 = vmatprep.subr.bf16.mxu0 0
        %1197 = vmatpush1.bf16.msra.mxu0 0
        %1198 = vmatprep.subr.bf16.mxu0 0
        %1199 = vmatpush1.bf16.msra.mxu0 0
        %1200 = vmatprep.subr.bf16.mxu0 0
        %1201 = vmatpush1.bf16.msra.mxu0 0
        %1202 = vmatprep.subr.bf16.mxu0 0
        %1203 = vmatpush1.bf16.msra.mxu0 0
        %1204 = vmatprep.mubr.bf16.mxu0 0
        %1205 = vmatmul.mubr.bf16.gmra.mrb[0].mxu0 %v1166
        %v1206 = vpop.f32.mrb[0].mxu0
        %v1207 = vadd.f32 0.0, %v1206
        %v1208 = vpop.f32.mrb[0].mxu0
        %v1209 = vpop.f32.mrb[0].mxu0
        %v1210 = vadd.f32 0.0, %v1209
        %v1211 = vpop.f32.mrb[0].mxu0
        %1212 = vdwg.mxu0
        %v1214 = vsel %vm681, %v1158, 0
        %v1217 = vsel %vm1168, %v1162, 0
        %1219 = vmatprep.subr.bf16.mxu0 0
        %1220 = vmatpush1.bf16.msra.mxu0 %v1217
        %1221 = vmatprep.subr.bf16.mxu0 0
        %1222 = vmatpush1.bf16.msra.mxu0 0
        %1223 = vmatprep.subr.bf16.mxu0 0
        %1224 = vmatpush1.bf16.msra.mxu0 0
        %1225 = vmatprep.subr.bf16.mxu0 0
        %1226 = vmatpush1.bf16.msra.mxu0 0
        %1227 = vmatprep.subr.bf16.mxu0 0
        %1228 = vmatpush1.bf16.msra.mxu0 0
        %1229 = vmatprep.subr.bf16.mxu0 0
        %1230 = vmatpush1.bf16.msra.mxu0 0
        %1231 = vmatprep.subr.bf16.mxu0 0
        %1232 = vmatpush1.bf16.msra.mxu0 0
        %1233 = vmatprep.subr.bf16.mxu0 0
        %1234 = vmatpush1.bf16.msra.mxu0 0
        %1235 = vmatprep.subr.bf16.mxu0 0
        %1236 = vmatpush1.bf16.msra.mxu0 0
        %1237 = vmatprep.subr.bf16.mxu0 0
        %1238 = vmatpush1.bf16.msra.mxu0 0
        %1239 = vmatprep.subr.bf16.mxu0 0
        %1240 = vmatpush1.bf16.msra.mxu0 0
        %1241 = vmatprep.subr.bf16.mxu0 0
        %1242 = vmatpush1.bf16.msra.mxu0 0
        %1243 = vmatprep.subr.bf16.mxu0 0
        %1244 = vmatpush1.bf16.msra.mxu0 0
        %1245 = vmatprep.subr.bf16.mxu0 0
        %1246 = vmatpush1.bf16.msra.mxu0 0
        %1247 = vmatprep.subr.bf16.mxu0 0
        %1248 = vmatpush1.bf16.msra.mxu0 0
        %1249 = vmatprep.subr.bf16.mxu0 0
        %1250 = vmatpush1.bf16.msra.mxu0 0
        %1251 = vmatprep.mubr.bf16.mxu0 0
        %1252 = vmatmul.mubr.bf16.gmra.mrb[0].mxu0 %v1214
        %v1253 = vpop.f32.mrb[0].mxu0
        %v1254 = vadd.f32 0.0, %v1253
        %v1255 = vpop.f32.mrb[0].mxu0
        %v1256 = vpop.f32.mrb[0].mxu0
        %v1257 = vadd.f32 0.0, %v1256
        %v1258 = vpop.f32.mrb[0].mxu0
        %1259 = vdwg.mxu0
        %v1261 = vsel %vm681, %v1159, 0
        %v1264 = vsel %vm1168, %v1163, 0
        %1266 = vmatprep.subr.bf16.mxu0 0
        %1267 = vmatpush1.bf16.msra.mxu0 %v1264
        %1268 = vmatprep.subr.bf16.mxu0 0
        %1269 = vmatpush1.bf16.msra.mxu0 0
        %1270 = vmatprep.subr.bf16.mxu0 0
        %1271 = vmatpush1.bf16.msra.mxu0 0
        %1272 = vmatprep.subr.bf16.mxu0 0
        %1273 = vmatpush1.bf16.msra.mxu0 0
        %1274 = vmatprep.subr.bf16.mxu0 0
        %1275 = vmatpush1.bf16.msra.mxu0 0
        %1276 = vmatprep.subr.bf16.mxu0 0
        %1277 = vmatpush1.bf16.msra.mxu0 0
        %1278 = vmatprep.subr.bf16.mxu0 0
        %1279 = vmatpush1.bf16.msra.mxu0 0
        %1280 = vmatprep.subr.bf16.mxu0 0
        %1281 = vmatpush1.bf16.msra.mxu0 0
        %1282 = vmatprep.subr.bf16.mxu0 0
        %1283 = vmatpush1.bf16.msra.mxu0 0
        %1284 = vmatprep.subr.bf16.mxu0 0
        %1285 = vmatpush1.bf16.msra.mxu0 0
        %1286 = vmatprep.subr.bf16.mxu0 0
        %1287 = vmatpush1.bf16.msra.mxu0 0
        %1288 = vmatprep.subr.bf16.mxu0 0
        %1289 = vmatpush1.bf16.msra.mxu0 0
        %1290 = vmatprep.subr.bf16.mxu0 0
        %1291 = vmatpush1.bf16.msra.mxu0 0
        %1292 = vmatprep.subr.bf16.mxu0 0
        %1293 = vmatpush1.bf16.msra.mxu0 0
        %1294 = vmatprep.subr.bf16.mxu0 0
        %1295 = vmatpush1.bf16.msra.mxu0 0
        %1296 = vmatprep.subr.bf16.mxu0 0
        %1297 = vmatpush1.bf16.msra.mxu0 0
        %1298 = vmatprep.mubr.bf16.mxu0 0
        %1299 = vmatmul.mubr.bf16.gmra.mrb[0].mxu0 %v1261
        %v1300 = vpop.f32.mrb[0].mxu0
        %v1301 = vadd.f32 0.0, %v1300
        %v1302 = vpop.f32.mrb[0].mxu0
        %v1303 = vpop.f32.mrb[0].mxu0
        %v1304 = vadd.f32 0.0, %v1303
        %v1305 = vpop.f32.mrb[0].mxu0
        %1306 = vdwg.mxu0
        %v1308 = vsel %vm681, %v1160, 0
        %v1311 = vsel %vm1168, %v1164, 0
        %1313 = vmatprep.subr.bf16.mxu0 0
        %1314 = vmatpush1.bf16.msra.mxu0 %v1311
        %1315 = vmatprep.subr.bf16.mxu0 0
        %1316 = vmatpush1.bf16.msra.mxu0 0
        %1317 = vmatprep.subr.bf16.mxu0 0
        %1318 = vmatpush1.bf16.msra.mxu0 0
        %1319 = vmatprep.subr.bf16.mxu0 0
        %1320 = vmatpush1.bf16.msra.mxu0 0
        %1321 = vmatprep.subr.bf16.mxu0 0
        %1322 = vmatpush1.bf16.msra.mxu0 0
        %1323 = vmatprep.subr.bf16.mxu0 0
        %1324 = vmatpush1.bf16.msra.mxu0 0
        %1325 = vmatprep.subr.bf16.mxu0 0
        %1326 = vmatpush1.bf16.msra.mxu0 0
        %1327 = vmatprep.subr.bf16.mxu0 0
        %1328 = vmatpush1.bf16.msra.mxu0 0
        %1329 = vmatprep.subr.bf16.mxu0 0
        %1330 = vmatpush1.bf16.msra.mxu0 0
        %1331 = vmatprep.subr.bf16.mxu0 0
        %1332 = vmatpush1.bf16.msra.mxu0 0
        %1333 = vmatprep.subr.bf16.mxu0 0
        %1334 = vmatpush1.bf16.msra.mxu0 0
        %1335 = vmatprep.subr.bf16.mxu0 0
        %1336 = vmatpush1.bf16.msra.mxu0 0
        %1337 = vmatprep.subr.bf16.mxu0 0
        %1338 = vmatpush1.bf16.msra.mxu0 0
        %1339 = vmatprep.subr.bf16.mxu0 0
        %1340 = vmatpush1.bf16.msra.mxu0 0
        %1341 = vmatprep.subr.bf16.mxu0 0
        %1342 = vmatpush1.bf16.msra.mxu0 0
        %1343 = vmatprep.subr.bf16.mxu0 0
        %1344 = vmatpush1.bf16.msra.mxu0 0
        %1345 = vmatprep.mubr.bf16.mxu0 0
        %1346 = vmatmul.mubr.bf16.gmra.mrb[0].mxu0 %v1308
        %v1347 = vpop.f32.mrb[0].mxu0
        %v1348 = vadd.f32 0.0, %v1347
        %v1349 = vpop.f32.mrb[0].mxu0
        %v1350 = vpop.f32.mrb[0].mxu0
        %v1351 = vadd.f32 0.0, %v1350
        %v1352 = vpop.f32.mrb[0].mxu0
        %1353 = vdwg.mxu0
        %v1354 = vsel %vm614, %v1207, 0.0
        %v1355 = vsel %vm614, %v1254, 0.0
        %v1356 = vadd.f32 %v1354, %v1355
        %v1357 = vsel %vm614, %v1301, 0.0
        %v1358 = vadd.f32 %v1356, %v1357
        %v1359 = vsel %vm614, %v1348, 0.0
        %v1360 = vadd.f32 %v1358, %v1359
        %v1361 = vsel %vm614, %v1210, 0.0
        %v1362 = vsel %vm614, %v1257, 0.0
        %v1363 = vadd.f32 %v1361, %v1362
        %v1364 = vsel %vm614, %v1304, 0.0
        %v1365 = vadd.f32 %v1363, %v1364
        %v1366 = vsel %vm614, %v1351, 0.0
        %v1367 = vadd.f32 %v1365, %v1366
        %v1368 = vld [vmem:[%s523] sm:$0x1]
        %v1370 = vlaneseq
        %v1371 = vshrl.u32 %v1370, 7
        %v1372 = vsub.s32 0, %v1371
        %v1373 = vrot.slane %v1368, %v1372
        %v1375 = vadd.f32 %v1360, %v1373
        %v1376 = vadd.f32 %v1367, %v1373
        %v1377 = vmul.f32 %v1375, 0.5
        %v1378 = vmul.f32 %v1376, 0.5
        %v1379 = vmul.f32 %v1375, 0.044715
        %v1380 = vmul.f32 %v1376, 0.044715
        %v1381 = vmul.f32 %v1379, %v1375
        %v1382 = vmul.f32 %v1380, %v1376
        %v1383 = vmul.f32 %v1381, %v1375
        %v1384 = vmul.f32 %v1382, %v1376
        %v1385 = vadd.f32 %v1375, %v1383
        %v1386 = vadd.f32 %v1376, %v1384
        %v1387 = vmul.f32 %v1385, 0.7978846
        %v1388 = vmul.f32 %v1386, 0.7978846
        %v1389 = vtanh.pop %v1387
        %v1390 = vtanh.pop %v1388
        %v1391 = vadd.f32 %v1389, 1.0
        %v1392 = vadd.f32 %v1390, 1.0
        %v1393 = vmul.f32 %v1377, %v1391
        %v1394 = vmul.f32 %v1378, %v1392
        %v1395 = vadd.f32 %v588, %v1393
        %v1396 = vadd.f32 %v589, %v1394
        %v1397 = vld [vmem:[%s526] sm:$0x1]
        %v1398 = vld [vmem:[%s529] sm:$0x1]
        %v1399 = vsel %vm614, %v1395, 0.0
        %1400 = vadd.xlane.f32.xlu0 %v1399
        %v1401 = vpop.xlane.xlu0 %1400
        %v1402 = vsel %vm614, %v1396, 0.0
        %1403 = vadd.xlane.f32.xlu0 %v1402
        %v1404 = vpop.xlane.xlu0 %1403
        %v1405 = vmul.f32 %v1401, 0.03125
        %v1406 = vmul.f32 %v1404, 0.03125
        %v1407 = vsub.f32 %v1395, %v1405
        %v1408 = vsub.f32 %v1396, %v1406
        %v1409 = vmul.f32 %v1407, %v1407
        %v1410 = vmul.f32 %v1408, %v1408
        %v1411 = vsel %vm614, %v1409, 0.0
        %1412 = vadd.xlane.f32.xlu0 %v1411
        %v1413 = vpop.xlane.xlu0 %1412
        %v1414 = vsel %vm614, %v1410, 0.0
        %1415 = vadd.xlane.f32.xlu0 %v1414
        %v1416 = vpop.xlane.xlu0 %1415
        %v1417 = vmul.f32 %v1413, 0.03125
        %v1418 = vmul.f32 %v1416, 0.03125
        %v1419 = vadd.f32 %v1417, 1e-10
        %v1420 = vadd.f32 %v1418, 1e-10
        %v1421 = vrsqrt.pop %v1419
        %v1422 = vrsqrt.pop %v1420
        %v1423 = vmul.f32 %v1407, %v1421
        %v1424 = vmul.f32 %v1408, %v1422
        %v1426 = vlaneseq
        %v1427 = vshrl.u32 %v1426, 7
        %v1428 = vsub.s32 0, %v1427
        %v1429 = vrot.slane %v1397, %v1428
        %v1431 = vmul.f32 %v1423, %v1429
        %v1432 = vmul.f32 %v1424, %v1429
        %v1434 = vlaneseq
        %v1435 = vshrl.u32 %v1434, 7
        %v1436 = vsub.s32 0, %v1435
        %v1437 = vrot.slane %v1398, %v1436
        %v1439 = vadd.f32 %v1431, %v1437
        %v1440 = vadd.f32 %v1432, %v1437
        %1441 = vst.msk [vmem:[#allocation2] sm:$0xff] %vm614, %v1439
        %1442 = vst.msk [vmem:[#allocation2 + $0x8] sm:$0xff] %vm614, %v1440
        %p1443 = scmp.eq.s32.totalorder %s28, 1
        // Predicated region
        $region89: #{tpu_custom_call.1} parent=63 // pred_check
          %p1444 = pneg %p1443
        $region90: #{tpu_custom_call.1} parent=63 // pred_check_branch
          %1446 = sbr.rel (%p1444) target = $region92
        $region91: #{tpu_custom_call.1} parent=63 // pred_region
          %1447 = vst.msk [vmem:[#allocation12] sm:$0xff] %vm614, %v1439
          %1448 = vst.msk [vmem:[#allocation12 + $0x8] sm:$0xff] %vm614, %v1440
        $region92: #{tpu_custom_call.1} parent=63 // pred_fallthru
          _
        // Predicated region
        $region93: #{tpu_custom_call.1} parent=63 // pred_check
          %p1449 = pneg %p302
        $region94: #{tpu_custom_call.1} parent=63 // pred_check_branch
          %1451 = sbr.rel (%p1449) target = $region96
        $region95: #{tpu_custom_call.1} parent=63 // pred_region
          %s1453 = ssub.s32 256, 256
          %1454 = vsyncadd [#allocation5], %s1453
          %s1455 = sshll.u32 [#allocation12], 4
          %s1456 = int_to_ptr.vmem [resolvable:$true] %s1455
          %1461 = dma.vmem_to_hbm [thread:$0]  %s1456, 256, %s11, [#allocation5], 128, 128, 8
        $region96: #{tpu_custom_call.1} parent=63 // pred_fallthru
          _
        // Predicated region
        $region97: #{tpu_custom_call.1} parent=63 // pred_check
          %p1462 = pneg %p302
        $region98: #{tpu_custom_call.1} parent=63 // pred_check_branch
          %1464 = sbr.rel (%p1462) target = $region100
        $region99: #{tpu_custom_call.1} parent=63 // pred_region
          %1465 = dma.done [#allocation5], 256
        $region100: #{tpu_custom_call.1} parent=63 // pred_fallthru
          _
      $region64: #{tpu_custom_call.1} parent=5 // pred_fallthru
        _
      %p1466 = scmp.le.s32.totalorder 2, %s23
      // Predicated region
      $region101: #{tpu_custom_call.1} parent=5 // pred_check
        %p1467 = pneg %p1466
      $region102: #{tpu_custom_call.1} parent=5 // pred_check_branch
        %1469 = sbr.rel (%p1467) target = $region104
      $region103: #{tpu_custom_call.1} parent=5 // pred_region
        %s1470 = ssub.s32 %s23, 2
      $region104: #{tpu_custom_call.1} parent=5 // pred_fallthru
        _
    $region6: #{tpu_custom_call.1} parent=1 // loop_footer
      %s27 = sadd.s32 1, %s23
    $region7: #{tpu_custom_call.1} parent=1 // loop_footer_branch
      %22 = sbr.rel target = $region3
    $region8: #{tpu_custom_call.1} parent=1 // loop_exit
      _
    %1471 = vsyncpa [#allocation4], 1
    %s1472 = scalar_lea.sflag [#allocation4], 1
    %1473 = vsyncpa %s1472, 1
    %1474 = vsyncpa [#allocation7], 1
    %1475 = vsyncpa [#allocation10], 1
    %s1476 = scalar_lea.sflag [#allocation10], 1
    %1477 = vsyncpa %s1476, 1
    %1478 = vsyncpa [#allocation5], 1
    %s1479 = scalar_lea.sflag [#allocation5], 1
    %1480 = vsyncpa %s1479, 1

</llo_original>
